<compile_context>
chip_gen: v6e
topology: v6e:2x2x1
jax: 0.10.0
libtpu: 0.0.40
codegen_flags: <defaults>
</compile_context>

<pallas_src>
import jax
import jax.numpy as jnp
import numpy as np
from jax.experimental import pallas as pl
from jax.experimental.pallas import tpu as pltpu


# ------------------------------ fused kernel --------------------------------

def _lenet_fused_kernel(x_ref, w1_ref, b1_ref, s1_ref, w2_ref, b2_ref, s2_ref,
                        g1_ref, fb1_ref, g2_ref, fb2_ref, g3_ref, fb3_ref,
                        o_ref):
    """One grid step = BT samples (BT = x_ref.shape[0] // 32).

    Row/lane layouts (BT samples stacked along sublanes):
      x_ref : (BT*32, 480) bf16  kh-im2col image; row = b*32 + oh (oh<28 valid),
                                 lane = kh*96 + w*3 + cin
      y1    : (BT*32, 168) f32   conv1+ReLU;  lane = ow*6 + co
      p1    : (BT*14, 162) f32   pool1;       row = b*14 + ph, lane = pw*12 + s (s<6)
      y2    : (BT*14-4,160)f32   conv2+ReLU;  row = b*14 + oh (oh<10), lane = ow*16 + co
      p2    : (BT*5, 144)  f32   pool2 (qh-major rows): row = qh*BT + b,
                                 lane = pw*32 + s (s<16)
      o_ref : (1, BT, 128) f32   logits; lanes 0..9 valid
    """
    f32, bf16 = jnp.float32, jnp.bfloat16
    bt = x_ref.shape[0] // 32
    n1 = bt * 32                 # conv1 rows (32-row stride per sample, 28 valid)
    n2 = bt * 14 - 4             # conv2 rows (14-row stride per sample, 10 valid)

    # ---- conv1: ONE matmul, M = BT*32 (kh-im2col done in the wrapper) ------
    acc1 = jnp.dot(x_ref[...], w1_ref[...], preferred_element_type=f32)
    y1 = jnp.maximum(acc1 + b1_ref[...], 0.0)                 # (BT*32, 168)

    # ---- pool1: shifted maxima + hoisted even-row selection matmul ---------
    m1 = jnp.maximum(y1[0:n1 - 1, :], y1[1:n1, :])            # (BT*32-1, 168)
    z1 = jnp.maximum(m1[:, 0:162], m1[:, 6:168])              # (BT*32-1, 162)
    p1 = jnp.dot(s1_ref[...], z1.astype(bf16), preferred_element_type=f32)

    # ---- conv2: 5 row-shift Toeplitz matmuls, M = BT*14-4 ------------------
    acc2 = jnp.dot(p1[0:n2, :].astype(bf16), w2_ref[0], preferred_element_type=f32)
    for kh in range(1, 5):
        acc2 = acc2 + jnp.dot(p1[kh:kh + n2, :].astype(bf16), w2_ref[kh],
                              preferred_element_type=f32)
    y2 = jnp.maximum(acc2 + b2_ref[...], 0.0)                 # (BT*14-4, 160)

    # ---- pool2 --------------------------------------------------------------
    m2 = jnp.maximum(y2[0:n2 - 1, :], y2[1:n2, :])            # (BT*14-5, 160)
    z2 = jnp.maximum(m2[:, 0:144], m2[:, 16:160])             # (BT*14-5, 144)
    p2 = jnp.dot(s2_ref[...], z2.astype(bf16), preferred_element_type=f32)

    # ---- fc1 (5 contiguous qh row-groups, M = BT each) / fc2 / fc3 ----------
    # TODO(synk): fc1 could be a single K=720 matmul via lane-concat, but batching
    # already gives it M=BT and the extra relayout is not obviously a win.
    h = jnp.dot(p2[0:bt, :].astype(bf16), g1_ref[0], preferred_element_type=f32)
    for qh in range(1, 5):
        h = h + jnp.dot(p2[qh * bt:(qh + 1) * bt, :].astype(bf16), g1_ref[qh],
                        preferred_element_type=f32)
    h = jnp.maximum(h + fb1_ref[...], 0.0)                    # (BT, 128)
    h = jnp.maximum(jnp.dot(h.astype(bf16), g2_ref[...], preferred_element_type=f32)
                    + fb2_ref[...], 0.0)                      # (BT, 128)
    out = jnp.dot(h.astype(bf16), g3_ref[...], preferred_element_type=f32) + fb3_ref[...]
    o_ref[0] = out


# ----------------------- parameter preparation (once) -----------------------

def _conv_toeplitz(w_oihw, in_group, in_c, out_w, k_width):
    """Block-Toeplitz matmul weights for a VALID conv on the layout
    rows = H, lanes = pw*in_group + slot (slot < in_c are real channels).

    T[kh, pw*in_group+slot, ow*C_out+co] = w[co, slot, kh, pw-ow]
    when slot < in_c and 0 <= pw-ow < KW, else 0.   Shape: (KH, k_width, out_w*C_out)
    """
    c_out, c_in, kh, kw = w_oihw.shape
    n = out_w * c_out
    k_idx = np.arange(k_width)
    pw = k_idx // in_group
    slot = k_idx % in_group
    n_idx = np.arange(n)
    ow = n_idx // c_out
    co = n_idx % c_out
    j = pw[:, None] - ow[None, :]                                  # (K, N)
    valid = (slot[:, None] < in_c) & (j >= 0) & (j < kw)
    jc = np.clip(j, 0, kw - 1)
    ci = np.minimum(slot, in_c - 1)
    i_idx = np.arange(kh)
    t = w_oihw[co[None, None, :], ci[None, :, None],
               i_idx[:, None, None], jc[None, :, :]]               # (KH, K, N)
    return t * jnp.asarray(valid[None, :, :], w_oihw.dtype)


def prepare_kernel_params(params):
    """Repack PyTorch-layout weights into kernel-ready operands (call once)."""
    f32, bf16 = jnp.float32, jnp.bfloat16
    w1 = params["conv1_w"].astype(f32)                             # (6, 3, 5, 5)
    w2 = params["conv2_w"].astype(f32)                             # (16, 6, 5, 5)

    t1 = _conv_toeplitz(w1, in_group=3, in_c=3, out_w=28, k_width=96)     # (5, 96, 168)
    t2 = _conv_toeplitz(w2, in_group=12, in_c=6, out_w=10, k_width=162)   # (5, 162, 160)
    w1m = t1.reshape(480, 168).astype(bf16)                        # single conv1 matrix
    w2m = t2.astype(bf16)                                          # (5, 162, 160)
    b1 = jnp.tile(params["conv1_b"].astype(f32), 28)[None, :]      # (1, 168)
    b2 = jnp.tile(params["conv2_b"].astype(f32), 10)[None, :]      # (1, 160)

    # fc1: fold the PyTorch .view(-1, 400) flatten order (c*25 + ph*5 + pw)
    # and the pooled-lane layout (lane = pw*32 + c, c < 16 valid) into 5
    # per-row K=144 blocks, padded to 128 output lanes.
    fc1_w = params["fc1_w"].astype(f32)                            # (400, 120)
    k_idx = np.arange(144)
    pw = k_idx // 32
    slot = k_idx % 32
    valid = slot < 16
    c = np.minimum(slot, 15)
    ph = np.arange(5)
    r = c[None, :] * 25 + ph[:, None] * 5 + pw[None, :]            # (5, 144)
    g1 = fc1_w[r, :] * jnp.asarray(valid, f32)[None, :, None]      # (5, 144, 120)
    g1 = jnp.pad(g1, ((0, 0), (0, 0), (0, 8))).astype(bf16)        # (5, 144, 128)

    g2 = jnp.pad(params["fc2_w"].astype(f32), ((0, 8), (0, 44))).astype(bf16)
    g3 = jnp.pad(params["fc3_w"].astype(f32), ((0, 44), (0, 118))).astype(bf16)
    fb1 = jnp.pad(params["fc1_b"].astype(f32), (0, 8))[None, :]    # (1, 128)
    fb2 = jnp.pad(params["fc2_b"].astype(f32), (0, 44))[None, :]
    fb3 = jnp.pad(params["fc3_b"].astype(f32), (0, 118))[None, :]

    return {"w1": w1m, "b1": b1, "w2": w2m, "b2": b2,
            "g1": g1, "fb1": fb1, "g2": g2, "fb2": fb2, "g3": g3, "fb3": fb3}


def _selection_matrices(bt):
    """Constant 0/1 row-selection matrices for the two max-pools (per BT)."""
    # pool1: pick per-sample even rows of m1 (row = b*32 + 2*ph -> b*14 + ph).
    s1 = np.zeros((bt * 14, bt * 32 - 1), np.float32)
    for b in range(bt):
        for ph in range(14):
            s1[b * 14 + ph, b * 32 + 2 * ph] = 1.0
    # pool2: pick per-sample even rows of m2, emitted qh-major so fc1's five
    # block-matmuls use contiguous row groups (row = b*14 + 2*qh -> qh*bt + b).
    s2 = np.zeros((5 * bt, bt * 14 - 5), np.float32)
    for qh in range(5):
        for b in range(bt):
            s2[qh * bt + b, b * 14 + 2 * qh] = 1.0
    return jnp.asarray(s1, jnp.bfloat16), jnp.asarray(s2, jnp.bfloat16)


# ------------------------------ forward pass --------------------------------

@jax.jit
def lenet_forward(kparams, x):
    """x: (B, 3, 32, 32) NCHW float32 -> (B, 10) logits."""
    b = x.shape[0]
    assert x.shape[1:] == (3, 32, 32)

    # Batch tile: fill MXU rows (BT*32 -> 256 on v6e/v7x) but keep >= 2 grid
    # steps when B >= 2 so v7x can shard steps across its two TensorCores.
    bt = min(8, max(1, (b + 1) // 2))
    bp = ((b + bt - 1) // bt) * bt
    nsteps = bp // bt

    # One-time layout prep in the wrapper (XLA): NCHW->NHWC, kh-im2col so
    # conv1 is a single matmul, pad rows 28->32 per sample for 8-alignment.
    xp = jnp.pad(x.astype(jnp.float32), ((0, bp - b), (0, 0), (0, 0), (0, 0)))
    x_nhwc = jnp.transpose(xp, (0, 2, 3, 1)).reshape(bp, 32, 96)
    xi = jnp.concatenate([x_nhwc[:, kh:kh + 28, :] for kh in range(5)], axis=-1)
    xi = jnp.pad(xi, ((0, 0), (0, 4), (0, 0)))                     # (bp, 32, 480)
    xi = xi.reshape(bp * 32, 480).astype(jnp.bfloat16)

    s1, s2 = _selection_matrices(bt)

    def const(shape):
        return pl.BlockSpec(shape, lambda i: (0,) * len(shape))

    out = pl.pallas_call(
        _lenet_fused_kernel,
        out_shape=jax.ShapeDtypeStruct((nsteps, bt, 128), jnp.float32),
        grid=(nsteps,),
        in_specs=[
            pl.BlockSpec((bt * 32, 480), lambda i: (i, 0)),        # BT images (im2col)
            const((480, 168)), const((1, 168)),                    # conv1
            const(tuple(s1.shape)),                                # pool1 selection
            const((5, 162, 160)), const((1, 160)),                 # conv2
            const(tuple(s2.shape)),                                # pool2 selection
            const((5, 144, 128)), const((1, 128)),                 # fc1
            const((128, 128)), const((1, 128)),                    # fc2
            const((128, 128)), const((1, 128)),                    # fc3
        ],
        out_specs=pl.BlockSpec((1, bt, 128), lambda i: (i, 0, 0)),
        compiler_params=pltpu.CompilerParams(
            dimension_semantics=("parallel",)),
    )(xi, kparams["w1"], kparams["b1"], s1, kparams["w2"], kparams["b2"], s2,
      kparams["g1"], kparams["fb1"], kparams["g2"], kparams["fb2"],
      kparams["g3"], kparams["fb3"])

    return out.reshape(bp, 128)[:b, :10]


# --------------------------- init & pure-JAX ref -----------------------------

def init_lenet_params(key):
    """Deterministic init mimicking PyTorch's default U(-1/sqrt(fan_in), ...)."""
    def uniform(k, shape, fan_in):
        bound = 1.0 / np.sqrt(fan_in)
        return jax.random.uniform(k, shape, jnp.float32, -bound, bound)

    ks = jax.random.split(key, 10)
    return {
        "conv1_w": uniform(ks[0], (6, 3, 5, 5), 3 * 5 * 5),
        "conv1_b": uniform(ks[1], (6,), 3 * 5 * 5),
        "conv2_w": uniform(ks[2], (16, 6, 5, 5), 6 * 5 * 5),
        "conv2_b": uniform(ks[3], (16,), 6 * 5 * 5),
        "fc1_w": uniform(ks[4], (400, 120), 400),   # stored (in, out)
        "fc1_b": uniform(ks[5], (120,), 400),
        "fc2_w": uniform(ks[6], (120, 84), 120),
        "fc2_b": uniform(ks[7], (84,), 120),
        "fc3_w": uniform(ks[8], (84, 10), 84),
        "fc3_b": uniform(ks[9], (10,), 84),
    }


def lenet_reference(params, x):
    """Pure-JAX reference matching the PyTorch module (for correctness check)."""
    hi = jax.lax.Precision.HIGHEST
    y = jax.lax.conv_general_dilated(
        x, params["conv1_w"], (1, 1), "VALID",
        dimension_numbers=("NCHW", "OIHW", "NCHW"), precision=hi)
    y = jnp.maximum(y + params["conv1_b"][None, :, None, None], 0.0)
    y = jax.lax.reduce_window(y, -jnp.inf, jax.lax.max,
                              (1, 1, 2, 2), (1, 1, 2, 2), "VALID")
    y = jax.lax.conv_general_dilated(
        y, params["conv2_w"], (1, 1), "VALID",
        dimension_numbers=("NCHW", "OIHW", "NCHW"), precision=hi)
    y = jnp.maximum(y + params["conv2_b"][None, :, None, None], 0.0)
    y = jax.lax.reduce_window(y, -jnp.inf, jax.lax.max,
                              (1, 1, 2, 2), (1, 1, 2, 2), "VALID")
    y = y.reshape(y.shape[0], -1)
    y = jnp.maximum(jnp.dot(y, params["fc1_w"], precision=hi) + params["fc1_b"], 0.0)
    y = jnp.maximum(jnp.dot(y, params["fc2_w"], precision=hi) + params["fc2_b"], 0.0)
    return jnp.dot(y, params["fc3_w"], precision=hi) + params["fc3_b"]


if __name__ == "__main__":
    key = jax.random.PRNGKey(0)
    k_params, k_x = jax.random.split(key)

    params = init_lenet_params(k_params)
    kparams = prepare_kernel_params(params)   # weight repacking, done once

    # LeNet's forward implies 32x32 RGB input (so the flatten gives 16*5*5=400).
    x = jax.random.normal(k_x, (2, 3, 32, 32), dtype=jnp.float32)
    out = jax.block_until_ready(lenet_forward(kparams, x))
    assert out.shape == (2, 10)
    ref = lenet_reference(params, x)
    # bf16 matmul operands (f32 accumulate) -> few-percent tolerance vs f32 ref.
    np.testing.assert_allclose(np.asarray(out), np.asarray(ref), rtol=3e-2, atol=3e-2)

    # Larger batch: exercises BT=8 batch tiling + batch padding path.
    xb = jax.random.normal(jax.random.PRNGKey(1), (19, 3, 32, 32), dtype=jnp.float32)
    outb = jax.block_until_ready(lenet_forward(kparams, xb))
    refb = lenet_reference(params, xb)
    np.testing.assert_allclose(np.asarray(outb), np.asarray(refb), rtol=3e-2, atol=3e-2)

    print("KERNEL_OK")
</pallas_src>

<mosaic_0001>
module attributes {stable_mosaic.version = 11 : i64} {
  func.func @_lenet_fused_kernel(%arg0: i32, %arg1: memref<32x480xbf16, #tpu.memory_space<vmem>>, %arg2: memref<480x168xbf16, #tpu.memory_space<vmem>>, %arg3: memref<1x168xf32, #tpu.memory_space<vmem>>, %arg4: memref<14x31xbf16, #tpu.memory_space<vmem>>, %arg5: memref<5x162x160xbf16, #tpu.memory_space<vmem>>, %arg6: memref<1x160xf32, #tpu.memory_space<vmem>>, %arg7: memref<5x9xbf16, #tpu.memory_space<vmem>>, %arg8: memref<5x144x128xbf16, #tpu.memory_space<vmem>>, %arg9: memref<1x128xf32, #tpu.memory_space<vmem>>, %arg10: memref<128x128xbf16, #tpu.memory_space<vmem>>, %arg11: memref<1x128xf32, #tpu.memory_space<vmem>>, %arg12: memref<128x128xbf16, #tpu.memory_space<vmem>>, %arg13: memref<1x128xf32, #tpu.memory_space<vmem>>, %arg14: memref<1x1x128xf32, #tpu.memory_space<vmem>>) attributes {dimension_semantics = [#tpu.dimension_semantics<parallel>], iteration_bounds = array<i64: 2>, scalar_prefetch = 0 : i64, scratch_operands = 0 : i64, tpu.core_type = #tpu.core_type<tc>, window_params = [{transform_indices = @transform_0, window_bounds = array<i64: 32, 480>}, {pipeline_mode = #tpu.pipeline_mode<synchronous>, transform_indices = @transform_1, window_bounds = array<i64: 480, 168>}, {pipeline_mode = #tpu.pipeline_mode<synchronous>, transform_indices = @transform_2, window_bounds = array<i64: 1, 168>}, {pipeline_mode = #tpu.pipeline_mode<synchronous>, transform_indices = @transform_3, window_bounds = array<i64: 14, 31>}, {pipeline_mode = #tpu.pipeline_mode<synchronous>, transform_indices = @transform_4, window_bounds = array<i64: 5, 162, 160>}, {pipeline_mode = #tpu.pipeline_mode<synchronous>, transform_indices = @transform_5, window_bounds = array<i64: 1, 160>}, {pipeline_mode = #tpu.pipeline_mode<synchronous>, transform_indices = @transform_6, window_bounds = array<i64: 5, 9>}, {pipeline_mode = #tpu.pipeline_mode<synchronous>, transform_indices = @transform_7, window_bounds = array<i64: 5, 144, 128>}, {pipeline_mode = #tpu.pipeline_mode<synchronous>, transform_indices = @transform_8, window_bounds = array<i64: 1, 128>}, {pipeline_mode = #tpu.pipeline_mode<synchronous>, transform_indices = @transform_9, window_bounds = array<i64: 128, 128>}, {pipeline_mode = #tpu.pipeline_mode<synchronous>, transform_indices = @transform_10, window_bounds = array<i64: 1, 128>}, {pipeline_mode = #tpu.pipeline_mode<synchronous>, transform_indices = @transform_11, window_bounds = array<i64: 128, 128>}, {pipeline_mode = #tpu.pipeline_mode<synchronous>, transform_indices = @transform_12, window_bounds = array<i64: 1, 128>}, {transform_indices = @transform_13, window_bounds = array<i64: 1, 1, 128>}]} {
    %c0 = arith.constant 0 : index
    %c0_0 = arith.constant 0 : index
    %0 = vector.load %arg1[%c0, %c0_0] : memref<32x480xbf16, #tpu.memory_space<vmem>>, vector<32x480xbf16>
    %c0_1 = arith.constant 0 : index
    %c0_2 = arith.constant 0 : index
    %1 = vector.load %arg2[%c0_1, %c0_2] : memref<480x168xbf16, #tpu.memory_space<vmem>>, vector<480x168xbf16>
    %cst = arith.constant dense<0.000000e+00> : vector<32x168xf32>
    %2 = tpu.matmul %0, %1, %cst {dimension_numbers = #tpu.dot_dimension_numbers<[1], [0], [0], [1], [0, 0, 1, 1], [], []>} : vector<32x480xbf16>, vector<480x168xbf16>, vector<32x168xf32> -> vector<32x168xf32>
    %c0_3 = arith.constant 0 : index
    %c0_4 = arith.constant 0 : index
    %3 = vector.load %arg3[%c0_3, %c0_4] : memref<1x168xf32, #tpu.memory_space<vmem>>, vector<1x168xf32>
    %4 = vector.broadcast %3 : vector<1x168xf32> to vector<32x168xf32>
    %5 = arith.addf %2, %4 : vector<32x168xf32>
    %cst_5 = arith.constant 0.000000e+00 : f32
    %6 = vector.broadcast %cst_5 : f32 to vector<32x168xf32>
    %7 = arith.maximumf %5, %6 : vector<32x168xf32>
    %8 = vector.extract_strided_slice %7 {offsets = [0, 0], sizes = [31, 168], strides = [1, 1]} : vector<32x168xf32> to vector<31x168xf32>
    %9 = vector.extract_strided_slice %7 {offsets = [1, 0], sizes = [31, 168], strides = [1, 1]} : vector<32x168xf32> to vector<31x168xf32>
    %10 = arith.maximumf %8, %9 : vector<31x168xf32>
    %11 = vector.extract_strided_slice %10 {offsets = [0, 0], sizes = [31, 162], strides = [1, 1]} : vector<31x168xf32> to vector<31x162xf32>
    %12 = vector.extract_strided_slice %10 {offsets = [0, 6], sizes = [31, 162], strides = [1, 1]} : vector<31x168xf32> to vector<31x162xf32>
    %13 = arith.maximumf %11, %12 : vector<31x162xf32>
    %c0_6 = arith.constant 0 : index
    %c0_7 = arith.constant 0 : index
    %14 = vector.load %arg4[%c0_6, %c0_7] : memref<14x31xbf16, #tpu.memory_space<vmem>>, vector<14x31xbf16>
    %15 = arith.truncf %13 : vector<31x162xf32> to vector<31x162xbf16>
    %cst_8 = arith.constant dense<0.000000e+00> : vector<14x162xf32>
    %16 = tpu.matmul %14, %15, %cst_8 {dimension_numbers = #tpu.dot_dimension_numbers<[1], [0], [0], [1], [0, 0, 1, 1], [], []>} : vector<14x31xbf16>, vector<31x162xbf16>, vector<14x162xf32> -> vector<14x162xf32>
    %17 = vector.extract_strided_slice %16 {offsets = [0, 0], sizes = [10, 162], strides = [1, 1]} : vector<14x162xf32> to vector<10x162xf32>
    %18 = arith.truncf %17 : vector<10x162xf32> to vector<10x162xbf16>
    %c0_9 = arith.constant 0 : index
    %c0_10 = arith.constant 0 : index
    %c0_11 = arith.constant 0 : index
    %19 = vector.load %arg5[%c0_9, %c0_10, %c0_11] : memref<5x162x160xbf16, #tpu.memory_space<vmem>>, vector<1x162x160xbf16>
    %20 = vector.shape_cast %19 : vector<1x162x160xbf16> to vector<162x160xbf16>
    %cst_12 = arith.constant dense<0.000000e+00> : vector<10x160xf32>
    %21 = tpu.matmul %18, %20, %cst_12 {dimension_numbers = #tpu.dot_dimension_numbers<[1], [0], [0], [1], [0, 0, 1, 1], [], []>} : vector<10x162xbf16>, vector<162x160xbf16>, vector<10x160xf32> -> vector<10x160xf32>
    %22 = vector.extract_strided_slice %16 {offsets = [1, 0], sizes = [10, 162], strides = [1, 1]} : vector<14x162xf32> to vector<10x162xf32>
    %23 = arith.truncf %22 : vector<10x162xf32> to vector<10x162xbf16>
    %c1 = arith.constant 1 : index
    %c0_13 = arith.constant 0 : index
    %c0_14 = arith.constant 0 : index
    %24 = vector.load %arg5[%c1, %c0_13, %c0_14] : memref<5x162x160xbf16, #tpu.memory_space<vmem>>, vector<1x162x160xbf16>
    %25 = vector.shape_cast %24 : vector<1x162x160xbf16> to vector<162x160xbf16>
    %cst_15 = arith.constant dense<0.000000e+00> : vector<10x160xf32>
    %26 = tpu.matmul %23, %25, %cst_15 {dimension_numbers = #tpu.dot_dimension_numbers<[1], [0], [0], [1], [0, 0, 1, 1], [], []>} : vector<10x162xbf16>, vector<162x160xbf16>, vector<10x160xf32> -> vector<10x160xf32>
    %27 = arith.addf %21, %26 : vector<10x160xf32>
    %28 = vector.extract_strided_slice %16 {offsets = [2, 0], sizes = [10, 162], strides = [1, 1]} : vector<14x162xf32> to vector<10x162xf32>
    %29 = arith.truncf %28 : vector<10x162xf32> to vector<10x162xbf16>
    %c2 = arith.constant 2 : index
    %c0_16 = arith.constant 0 : index
    %c0_17 = arith.constant 0 : index
    %30 = vector.load %arg5[%c2, %c0_16, %c0_17] : memref<5x162x160xbf16, #tpu.memory_space<vmem>>, vector<1x162x160xbf16>
    %31 = vector.shape_cast %30 : vector<1x162x160xbf16> to vector<162x160xbf16>
    %cst_18 = arith.constant dense<0.000000e+00> : vector<10x160xf32>
    %32 = tpu.matmul %29, %31, %cst_18 {dimension_numbers = #tpu.dot_dimension_numbers<[1], [0], [0], [1], [0, 0, 1, 1], [], []>} : vector<10x162xbf16>, vector<162x160xbf16>, vector<10x160xf32> -> vector<10x160xf32>
    %33 = arith.addf %27, %32 : vector<10x160xf32>
    %34 = vector.extract_strided_slice %16 {offsets = [3, 0], sizes = [10, 162], strides = [1, 1]} : vector<14x162xf32> to vector<10x162xf32>
    %35 = arith.truncf %34 : vector<10x162xf32> to vector<10x162xbf16>
    %c3 = arith.constant 3 : index
    %c0_19 = arith.constant 0 : index
    %c0_20 = arith.constant 0 : index
    %36 = vector.load %arg5[%c3, %c0_19, %c0_20] : memref<5x162x160xbf16, #tpu.memory_space<vmem>>, vector<1x162x160xbf16>
    %37 = vector.shape_cast %36 : vector<1x162x160xbf16> to vector<162x160xbf16>
    %cst_21 = arith.constant dense<0.000000e+00> : vector<10x160xf32>
    %38 = tpu.matmul %35, %37, %cst_21 {dimension_numbers = #tpu.dot_dimension_numbers<[1], [0], [0], [1], [0, 0, 1, 1], [], []>} : vector<10x162xbf16>, vector<162x160xbf16>, vector<10x160xf32> -> vector<10x160xf32>
    %39 = arith.addf %33, %38 : vector<10x160xf32>
    %40 = vector.extract_strided_slice %16 {offsets = [4, 0], sizes = [10, 162], strides = [1, 1]} : vector<14x162xf32> to vector<10x162xf32>
    %41 = arith.truncf %40 : vector<10x162xf32> to vector<10x162xbf16>
    %c4 = arith.constant 4 : index
    %c0_22 = arith.constant 0 : index
    %c0_23 = arith.constant 0 : index
    %42 = vector.load %arg5[%c4, %c0_22, %c0_23] : memref<5x162x160xbf16, #tpu.memory_space<vmem>>, vector<1x162x160xbf16>
    %43 = vector.shape_cast %42 : vector<1x162x160xbf16> to vector<162x160xbf16>
    %cst_24 = arith.constant dense<0.000000e+00> : vector<10x160xf32>
    %44 = tpu.matmul %41, %43, %cst_24 {dimension_numbers = #tpu.dot_dimension_numbers<[1], [0], [0], [1], [0, 0, 1, 1], [], []>} : vector<10x162xbf16>, vector<162x160xbf16>, vector<10x160xf32> -> vector<10x160xf32>
    %45 = arith.addf %39, %44 : vector<10x160xf32>
    %c0_25 = arith.constant 0 : index
    %c0_26 = arith.constant 0 : index
    %46 = vector.load %arg6[%c0_25, %c0_26] : memref<1x160xf32, #tpu.memory_space<vmem>>, vector<1x160xf32>
    %47 = vector.broadcast %46 : vector<1x160xf32> to vector<10x160xf32>
    %48 = arith.addf %45, %47 : vector<10x160xf32>
    %cst_27 = arith.constant 0.000000e+00 : f32
    %49 = vector.broadcast %cst_27 : f32 to vector<10x160xf32>
    %50 = arith.maximumf %48, %49 : vector<10x160xf32>
    %51 = vector.extract_strided_slice %50 {offsets = [0, 0], sizes = [9, 160], strides = [1, 1]} : vector<10x160xf32> to vector<9x160xf32>
    %52 = vector.extract_strided_slice %50 {offsets = [1, 0], sizes = [9, 160], strides = [1, 1]} : vector<10x160xf32> to vector<9x160xf32>
    %53 = arith.maximumf %51, %52 : vector<9x160xf32>
    %54 = vector.extract_strided_slice %53 {offsets = [0, 0], sizes = [9, 144], strides = [1, 1]} : vector<9x160xf32> to vector<9x144xf32>
    %55 = vector.extract_strided_slice %53 {offsets = [0, 16], sizes = [9, 144], strides = [1, 1]} : vector<9x160xf32> to vector<9x144xf32>
    %56 = arith.maximumf %54, %55 : vector<9x144xf32>
    %c0_28 = arith.constant 0 : index
    %c0_29 = arith.constant 0 : index
    %57 = vector.load %arg7[%c0_28, %c0_29] : memref<5x9xbf16, #tpu.memory_space<vmem>>, vector<5x9xbf16>
    %58 = arith.truncf %56 : vector<9x144xf32> to vector<9x144xbf16>
    %cst_30 = arith.constant dense<0.000000e+00> : vector<5x144xf32>
    %59 = tpu.matmul %57, %58, %cst_30 {dimension_numbers = #tpu.dot_dimension_numbers<[1], [0], [0], [1], [0, 0, 1, 1], [], []>} : vector<5x9xbf16>, vector<9x144xbf16>, vector<5x144xf32> -> vector<5x144xf32>
    %60 = vector.extract_strided_slice %59 {offsets = [0, 0], sizes = [1, 144], strides = [1, 1]} : vector<5x144xf32> to vector<1x144xf32>
    %61 = arith.truncf %60 : vector<1x144xf32> to vector<1x144xbf16>
    %c0_31 = arith.constant 0 : index
    %c0_32 = arith.constant 0 : index
    %c0_33 = arith.constant 0 : index
    %62 = vector.load %arg8[%c0_31, %c0_32, %c0_33] : memref<5x144x128xbf16, #tpu.memory_space<vmem>>, vector<1x144x128xbf16>
    %63 = vector.shape_cast %62 : vector<1x144x128xbf16> to vector<144x128xbf16>
    %cst_34 = arith.constant dense<0.000000e+00> : vector<1x128xf32>
    %64 = tpu.matmul %61, %63, %cst_34 {dimension_numbers = #tpu.dot_dimension_numbers<[1], [0], [0], [1], [0, 0, 1, 1], [], []>} : vector<1x144xbf16>, vector<144x128xbf16>, vector<1x128xf32> -> vector<1x128xf32>
    %65 = vector.extract_strided_slice %59 {offsets = [1, 0], sizes = [1, 144], strides = [1, 1]} : vector<5x144xf32> to vector<1x144xf32>
    %66 = arith.truncf %65 : vector<1x144xf32> to vector<1x144xbf16>
    %c1_35 = arith.constant 1 : index
    %c0_36 = arith.constant 0 : index
    %c0_37 = arith.constant 0 : index
    %67 = vector.load %arg8[%c1_35, %c0_36, %c0_37] : memref<5x144x128xbf16, #tpu.memory_space<vmem>>, vector<1x144x128xbf16>
    %68 = vector.shape_cast %67 : vector<1x144x128xbf16> to vector<144x128xbf16>
    %cst_38 = arith.constant dense<0.000000e+00> : vector<1x128xf32>
    %69 = tpu.matmul %66, %68, %cst_38 {dimension_numbers = #tpu.dot_dimension_numbers<[1], [0], [0], [1], [0, 0, 1, 1], [], []>} : vector<1x144xbf16>, vector<144x128xbf16>, vector<1x128xf32> -> vector<1x128xf32>
    %70 = arith.addf %64, %69 : vector<1x128xf32>
    %71 = vector.extract_strided_slice %59 {offsets = [2, 0], sizes = [1, 144], strides = [1, 1]} : vector<5x144xf32> to vector<1x144xf32>
    %72 = arith.truncf %71 : vector<1x144xf32> to vector<1x144xbf16>
    %c2_39 = arith.constant 2 : index
    %c0_40 = arith.constant 0 : index
    %c0_41 = arith.constant 0 : index
    %73 = vector.load %arg8[%c2_39, %c0_40, %c0_41] : memref<5x144x128xbf16, #tpu.memory_space<vmem>>, vector<1x144x128xbf16>
    %74 = vector.shape_cast %73 : vector<1x144x128xbf16> to vector<144x128xbf16>
    %cst_42 = arith.constant dense<0.000000e+00> : vector<1x128xf32>
    %75 = tpu.matmul %72, %74, %cst_42 {dimension_numbers = #tpu.dot_dimension_numbers<[1], [0], [0], [1], [0, 0, 1, 1], [], []>} : vector<1x144xbf16>, vector<144x128xbf16>, vector<1x128xf32> -> vector<1x128xf32>
    %76 = arith.addf %70, %75 : vector<1x128xf32>
    %77 = vector.extract_strided_slice %59 {offsets = [3, 0], sizes = [1, 144], strides = [1, 1]} : vector<5x144xf32> to vector<1x144xf32>
    %78 = arith.truncf %77 : vector<1x144xf32> to vector<1x144xbf16>
    %c3_43 = arith.constant 3 : index
    %c0_44 = arith.constant 0 : index
    %c0_45 = arith.constant 0 : index
    %79 = vector.load %arg8[%c3_43, %c0_44, %c0_45] : memref<5x144x128xbf16, #tpu.memory_space<vmem>>, vector<1x144x128xbf16>
    %80 = vector.shape_cast %79 : vector<1x144x128xbf16> to vector<144x128xbf16>
    %cst_46 = arith.constant dense<0.000000e+00> : vector<1x128xf32>
    %81 = tpu.matmul %78, %80, %cst_46 {dimension_numbers = #tpu.dot_dimension_numbers<[1], [0], [0], [1], [0, 0, 1, 1], [], []>} : vector<1x144xbf16>, vector<144x128xbf16>, vector<1x128xf32> -> vector<1x128xf32>
    %82 = arith.addf %76, %81 : vector<1x128xf32>
    %83 = vector.extract_strided_slice %59 {offsets = [4, 0], sizes = [1, 144], strides = [1, 1]} : vector<5x144xf32> to vector<1x144xf32>
    %84 = arith.truncf %83 : vector<1x144xf32> to vector<1x144xbf16>
    %c4_47 = arith.constant 4 : index
    %c0_48 = arith.constant 0 : index
    %c0_49 = arith.constant 0 : index
    %85 = vector.load %arg8[%c4_47, %c0_48, %c0_49] : memref<5x144x128xbf16, #tpu.memory_space<vmem>>, vector<1x144x128xbf16>
    %86 = vector.shape_cast %85 : vector<1x144x128xbf16> to vector<144x128xbf16>
    %cst_50 = arith.constant dense<0.000000e+00> : vector<1x128xf32>
    %87 = tpu.matmul %84, %86, %cst_50 {dimension_numbers = #tpu.dot_dimension_numbers<[1], [0], [0], [1], [0, 0, 1, 1], [], []>} : vector<1x144xbf16>, vector<144x128xbf16>, vector<1x128xf32> -> vector<1x128xf32>
    %88 = arith.addf %82, %87 : vector<1x128xf32>
    %c0_51 = arith.constant 0 : index
    %c0_52 = arith.constant 0 : index
    %89 = vector.load %arg9[%c0_51, %c0_52] : memref<1x128xf32, #tpu.memory_space<vmem>>, vector<1x128xf32>
    %90 = arith.addf %88, %89 : vector<1x128xf32>
    %cst_53 = arith.constant 0.000000e+00 : f32
    %91 = vector.broadcast %cst_53 : f32 to vector<1x128xf32>
    %92 = arith.maximumf %90, %91 : vector<1x128xf32>
    %93 = arith.truncf %92 : vector<1x128xf32> to vector<1x128xbf16>
    %c0_54 = arith.constant 0 : index
    %c0_55 = arith.constant 0 : index
    %94 = vector.load %arg10[%c0_54, %c0_55] : memref<128x128xbf16, #tpu.memory_space<vmem>>, vector<128x128xbf16>
    %cst_56 = arith.constant dense<0.000000e+00> : vector<1x128xf32>
    %95 = tpu.matmul %93, %94, %cst_56 {dimension_numbers = #tpu.dot_dimension_numbers<[1], [0], [0], [1], [0, 0, 1, 1], [], []>} : vector<1x128xbf16>, vector<128x128xbf16>, vector<1x128xf32> -> vector<1x128xf32>
    %c0_57 = arith.constant 0 : index
    %c0_58 = arith.constant 0 : index
    %96 = vector.load %arg11[%c0_57, %c0_58] : memref<1x128xf32, #tpu.memory_space<vmem>>, vector<1x128xf32>
    %97 = arith.addf %95, %96 : vector<1x128xf32>
    %cst_59 = arith.constant 0.000000e+00 : f32
    %98 = vector.broadcast %cst_59 : f32 to vector<1x128xf32>
    %99 = arith.maximumf %97, %98 : vector<1x128xf32>
    %100 = arith.truncf %99 : vector<1x128xf32> to vector<1x128xbf16>
    %c0_60 = arith.constant 0 : index
    %c0_61 = arith.constant 0 : index
    %101 = vector.load %arg12[%c0_60, %c0_61] : memref<128x128xbf16, #tpu.memory_space<vmem>>, vector<128x128xbf16>
    %cst_62 = arith.constant dense<0.000000e+00> : vector<1x128xf32>
    %102 = tpu.matmul %100, %101, %cst_62 {dimension_numbers = #tpu.dot_dimension_numbers<[1], [0], [0], [1], [0, 0, 1, 1], [], []>} : vector<1x128xbf16>, vector<128x128xbf16>, vector<1x128xf32> -> vector<1x128xf32>
    %c0_63 = arith.constant 0 : index
    %c0_64 = arith.constant 0 : index
    %103 = vector.load %arg13[%c0_63, %c0_64] : memref<1x128xf32, #tpu.memory_space<vmem>>, vector<1x128xf32>
    %104 = arith.addf %102, %103 : vector<1x128xf32>
    %c0_65 = arith.constant 0 : index
    %c0_66 = arith.constant 0 : index
    %c0_67 = arith.constant 0 : index
    %105 = vector.load %arg14[%c0_65, %c0_66, %c0_67] : memref<1x1x128xf32, #tpu.memory_space<vmem>>, vector<1x1x128xf32>
    %106 = vector.shape_cast %105 : vector<1x1x128xf32> to vector<1x128xf32>
    %107 = vector.shape_cast %104 : vector<1x128xf32> to vector<1x1x128xf32>
    tpu.vector_store %arg14[%c0_65, %c0_66, %c0_67], %107 {strides = array<i32>} : memref<1x1x128xf32, #tpu.memory_space<vmem>>, vector<1x1x128xf32>,
    return
  }
  func.func @transform_0(%arg0: i32) -> (i32, i32) {
    %c0_i32 = arith.constant 0 : i32
    %c0_i32_0 = arith.constant 0 : i32
    return %arg0, %c0_i32 : i32, i32
  }
  func.func @transform_1(%arg0: i32) -> (i32, i32) {
    %c0_i32 = arith.constant 0 : i32
    %c0_i32_0 = arith.constant 0 : i32
    %c0_i32_1 = arith.constant 0 : i32
    return %c0_i32, %c0_i32_0 : i32, i32
  }
  func.func @transform_2(%arg0: i32) -> (i32, i32) {
    %c0_i32 = arith.constant 0 : i32
    %c0_i32_0 = arith.constant 0 : i32
    %c0_i32_1 = arith.constant 0 : i32
    return %c0_i32, %c0_i32_0 : i32, i32
  }
  func.func @transform_3(%arg0: i32) -> (i32, i32) {
    %c0_i32 = arith.constant 0 : i32
    %c0_i32_0 = arith.constant 0 : i32
    %c0_i32_1 = arith.constant 0 : i32
    return %c0_i32, %c0_i32_0 : i32, i32
  }
  func.func @transform_4(%arg0: i32) -> (i32, i32, i32) {
    %c0_i32 = arith.constant 0 : i32
    %c0_i32_0 = arith.constant 0 : i32
    %c0_i32_1 = arith.constant 0 : i32
    %c0_i32_2 = arith.constant 0 : i32
    return %c0_i32, %c0_i32_0, %c0_i32_1 : i32, i32, i32
  }
  func.func @transform_5(%arg0: i32) -> (i32, i32) {
    %c0_i32 = arith.constant 0 : i32
    %c0_i32_0 = arith.constant 0 : i32
    %c0_i32_1 = arith.constant 0 : i32
    return %c0_i32, %c0_i32_0 : i32, i32
  }
  func.func @transform_6(%arg0: i32) -> (i32, i32) {
    %c0_i32 = arith.constant 0 : i32
    %c0_i32_0 = arith.constant 0 : i32
    %c0_i32_1 = arith.constant 0 : i32
    return %c0_i32, %c0_i32_0 : i32, i32
  }
  func.func @transform_7(%arg0: i32) -> (i32, i32, i32) {
    %c0_i32 = arith.constant 0 : i32
    %c0_i32_0 = arith.constant 0 : i32
    %c0_i32_1 = arith.constant 0 : i32
    %c0_i32_2 = arith.constant 0 : i32
    return %c0_i32, %c0_i32_0, %c0_i32_1 : i32, i32, i32
  }
  func.func @transform_8(%arg0: i32) -> (i32, i32) {
    %c0_i32 = arith.constant 0 : i32
    %c0_i32_0 = arith.constant 0 : i32
    %c0_i32_1 = arith.constant 0 : i32
    return %c0_i32, %c0_i32_0 : i32, i32
  }
  func.func @transform_9(%arg0: i32) -> (i32, i32) {
    %c0_i32 = arith.constant 0 : i32
    %c0_i32_0 = arith.constant 0 : i32
    %c0_i32_1 = arith.constant 0 : i32
    return %c0_i32, %c0_i32_0 : i32, i32
  }
  func.func @transform_10(%arg0: i32) -> (i32, i32) {
    %c0_i32 = arith.constant 0 : i32
    %c0_i32_0 = arith.constant 0 : i32
    %c0_i32_1 = arith.constant 0 : i32
    return %c0_i32, %c0_i32_0 : i32, i32
  }
  func.func @transform_11(%arg0: i32) -> (i32, i32) {
    %c0_i32 = arith.constant 0 : i32
    %c0_i32_0 = arith.constant 0 : i32
    %c0_i32_1 = arith.constant 0 : i32
    return %c0_i32, %c0_i32_0 : i32, i32
  }
  func.func @transform_12(%arg0: i32) -> (i32, i32) {
    %c0_i32 = arith.constant 0 : i32
    %c0_i32_0 = arith.constant 0 : i32
    %c0_i32_1 = arith.constant 0 : i32
    return %c0_i32, %c0_i32_0 : i32, i32
  }
  func.func @transform_13(%arg0: i32) -> (i32, i32, i32) {
    %c0_i32 = arith.constant 0 : i32
    %c0_i32_0 = arith.constant 0 : i32
    %c0_i32_1 = arith.constant 0 : i32
    return %arg0, %c0_i32, %c0_i32_0 : i32, i32, i32
  }
}

</mosaic_0001>

<llo_original>
// kernel: lenet_forward.1
$region0: #{lenet_forward.1}
  #allocation0 [shape = 'u32[]', space=smem, size = 0x4, offset = 0x4, fixed_abs, tag = 'smem constant byte address 0x4 - core index']
  #allocation1 [shape = 'u32[144,128]{1,0:T(1,128)}', space=vmem, size = 0x12000, scoped, tag = 'internal scratch']
  %s0 = inlined_call_operand.vmem [shape: bf16[64,480], index: 0, kind: input, shape index: {}]
  %s1 = inlined_call_operand.vmem [shape: bf16[480,168], index: 1, kind: input, shape index: {}]
  %s2 = inlined_call_operand.vmem [shape: f32[1,168], index: 2, kind: input, shape index: {}]
  %s3 = inlined_call_operand.vmem [shape: bf16[14,31], index: 3, kind: input, shape index: {}]
  %s4 = inlined_call_operand.vmem [shape: bf16[5,162,160], index: 4, kind: input, shape index: {}]
  %s5 = inlined_call_operand.vmem [shape: f32[1,160], index: 5, kind: input, shape index: {}]
  %s6 = inlined_call_operand.vmem [shape: bf16[5,9], index: 6, kind: input, shape index: {}]
  %s7 = inlined_call_operand.vmem [shape: bf16[5,144,128], index: 7, kind: input, shape index: {}]
  %s8 = inlined_call_operand.vmem [shape: f32[1,128], index: 8, kind: input, shape index: {}]
  %s9 = inlined_call_operand.vmem [shape: bf16[128,128], index: 9, kind: input, shape index: {}]
  %s10 = inlined_call_operand.vmem [shape: f32[1,128], index: 10, kind: input, shape index: {}]
  %s11 = inlined_call_operand.vmem [shape: bf16[128,128], index: 11, kind: input, shape index: {}]
  %s12 = inlined_call_operand.vmem [shape: f32[1,128], index: 12, kind: input, shape index: {}]
  %s13 = inlined_call_operand.hbm [shape: f32[2,1,128], index: 13, kind: output, shape index: {}]
  %s14 = sld [smem:[#allocation0]]
  $region85: #{lenet_forward.1} parent=0
    _
  %s16 = ssub.s32 1, %s14
  %s17 = scalar_select 0, %s16, %s14
  $region1: #{lenet_forward.1} parent=0
    #allocation2 [shape = 'u8[1024]{0}', space=vmem, size = 0x400, scoped, tag = 'output window, operand 0']
    #allocation3 [shape = 's32[2]{0}', space=sflag, size = 0x8, scoped, tag = 'scoped memory for lenet_forward.1']
    %18 = vsyncpa [#allocation3], 0
    %s19 = scalar_lea.sflag [#allocation3], 1
    %20 = vsyncpa %s19, 0
    loop: start=0, step=1, limit=4
    $region2: #{lenet_forward.1} parent=1 // loop_pre_header
      _
    $region3: #{lenet_forward.1} parent=1 // loop_header
      %s22 = sphi 0, %s26
      %p23 = scmp.ge.s32.totalorder %s22, 4
      %s32 = sphi 0, %s34
      %s35 = sphi 0, %s32
      %s36 = sphi 0, %s35
      %s52 = sphi 0, %s36
      %s56 = sphi 0, %s56
      %s58 = sphi 0, %s56
      %s59 = sphi 0, %s58
      %s73 = sphi 0, %s59
      %s77 = sphi 0, %s77
      %s79 = sphi 0, %s77
      %s80 = sphi 0, %s79
      %s94 = sphi 0, %s80
      %s98 = sphi 0, %s98
      %s100 = sphi 0, %s98
      %s101 = sphi 0, %s100
      %s115 = sphi 0, %s101
      %s119 = sphi 0, %s119
      %s121 = sphi 0, %s119
      %s122 = sphi 0, %s121
      %s136 = sphi 0, %s122
      %s140 = sphi 0, %s140
      %s142 = sphi 0, %s140
      %s143 = sphi 0, %s142
      %s157 = sphi 0, %s143
      %s161 = sphi 0, %s161
      %s163 = sphi 0, %s161
      %s164 = sphi 0, %s163
      %s178 = sphi 0, %s164
      %s182 = sphi 0, %s182
      %s184 = sphi 0, %s182
      %s185 = sphi 0, %s184
      %s199 = sphi 0, %s185
      %s203 = sphi 0, %s203
      %s205 = sphi 0, %s203
      %s206 = sphi 0, %s205
      %s220 = sphi 0, %s206
      %s224 = sphi 0, %s224
      %s226 = sphi 0, %s224
      %s227 = sphi 0, %s226
      %s241 = sphi 0, %s227
      %s245 = sphi 0, %s245
      %s247 = sphi 0, %s245
      %s248 = sphi 0, %s247
      %s262 = sphi 0, %s248
      %s266 = sphi 0, %s266
      %s268 = sphi 0, %s266
      %s269 = sphi 0, %s268
      %s283 = sphi 0, %s269
      %s287 = sphi 0, %s287
      %s289 = sphi 0, %s287
      %s290 = sphi 0, %s289
      %s304 = sphi 0, %s290
      %s310 = sphi 0, %s312
      %s313 = sphi 0, %s310
      %s314 = sphi 0, %s313
      %s330 = sphi 0, %s314
    $region4: #{lenet_forward.1} parent=1 // loop_header_branch
      %25 = sbr.rel (%p23) target = $region8
    $region5: #{lenet_forward.1} parent=1 // loop_body
      %s27 = ssub.s32 %s22, 1
      %s28 = ssub.s32 %s22, 2
      %s29 = sadd.s32 %s22, 1
      %s30 = ssub.s32 %s22, %s29
      %p31 = scmp.eq.s32.totalorder %s30, 0
      %s33 = sadd.s32 %s32, 1
      %s34 = scalar_select %p31, %s32, %s33
      %p37 = pneg %p31
      %p38 = scmp.eq.s32.totalorder %s22, 1
      %p39 = por %p37, %p38
      %p40 = scmp.ne.s32.totalorder %s32, %s35
      %p41 = scmp.eq.s32.totalorder %s22, 0
      %p42 = por %p40, %p41
      %p43 = scmp.ne.s32.totalorder %s32, %s35
      %p44 = scmp.eq.s32.totalorder %s27, 1
      %p45 = por %p43, %p44
      %p46 = scmp.ne.s32.totalorder %s35, %s36
      %p47 = scmp.eq.s32.totalorder %s27, 0
      %p48 = por %p46, %p47
      %p49 = scmp.ne.s32.totalorder %s35, %s36
      %p50 = scmp.eq.s32.totalorder %s28, 1
      %p51 = por %p49, %p50
      %p53 = scmp.ne.s32.totalorder %s36, %s52
      %p54 = scmp.eq.s32.totalorder %s28, 0
      %p55 = por %p53, %p54
      %s57 = sadd.s32 %s56, 1
      %p60 = scmp.eq.s32.totalorder %s22, 1
      %p61 = scmp.ne.s32.totalorder %s56, %s58
      %p62 = scmp.eq.s32.totalorder %s22, 0
      %p63 = por %p61, %p62
      %p64 = scmp.ne.s32.totalorder %s56, %s58
      %p65 = scmp.eq.s32.totalorder %s27, 1
      %p66 = por %p64, %p65
      %p67 = scmp.ne.s32.totalorder %s58, %s59
      %p68 = scmp.eq.s32.totalorder %s27, 0
      %p69 = por %p67, %p68
      %p70 = scmp.ne.s32.totalorder %s58, %s59
      %p71 = scmp.eq.s32.totalorder %s28, 1
      %p72 = por %p70, %p71
      %p74 = scmp.ne.s32.totalorder %s59, %s73
      %p75 = scmp.eq.s32.totalorder %s28, 0
      %p76 = por %p74, %p75
      %s78 = sadd.s32 %s77, 1
      %p81 = scmp.eq.s32.totalorder %s22, 1
      %p82 = scmp.ne.s32.totalorder %s77, %s79
      %p83 = scmp.eq.s32.totalorder %s22, 0
      %p84 = por %p82, %p83
      %p85 = scmp.ne.s32.totalorder %s77, %s79
      %p86 = scmp.eq.s32.totalorder %s27, 1
      %p87 = por %p85, %p86
      %p88 = scmp.ne.s32.totalorder %s79, %s80
      %p89 = scmp.eq.s32.totalorder %s27, 0
      %p90 = por %p88, %p89
      %p91 = scmp.ne.s32.totalorder %s79, %s80
      %p92 = scmp.eq.s32.totalorder %s28, 1
      %p93 = por %p91, %p92
      %p95 = scmp.ne.s32.totalorder %s80, %s94
      %p96 = scmp.eq.s32.totalorder %s28, 0
      %p97 = por %p95, %p96
      %s99 = sadd.s32 %s98, 1
      %p102 = scmp.eq.s32.totalorder %s22, 1
      %p103 = scmp.ne.s32.totalorder %s98, %s100
      %p104 = scmp.eq.s32.totalorder %s22, 0
      %p105 = por %p103, %p104
      %p106 = scmp.ne.s32.totalorder %s98, %s100
      %p107 = scmp.eq.s32.totalorder %s27, 1
      %p108 = por %p106, %p107
      %p109 = scmp.ne.s32.totalorder %s100, %s101
      %p110 = scmp.eq.s32.totalorder %s27, 0
      %p111 = por %p109, %p110
      %p112 = scmp.ne.s32.totalorder %s100, %s101
      %p113 = scmp.eq.s32.totalorder %s28, 1
      %p114 = por %p112, %p113
      %p116 = scmp.ne.s32.totalorder %s101, %s115
      %p117 = scmp.eq.s32.totalorder %s28, 0
      %p118 = por %p116, %p117
      %s120 = sadd.s32 %s119, 1
      %p123 = scmp.eq.s32.totalorder %s22, 1
      %p124 = scmp.ne.s32.totalorder %s119, %s121
      %p125 = scmp.eq.s32.totalorder %s22, 0
      %p126 = por %p124, %p125
      %p127 = scmp.ne.s32.totalorder %s119, %s121
      %p128 = scmp.eq.s32.totalorder %s27, 1
      %p129 = por %p127, %p128
      %p130 = scmp.ne.s32.totalorder %s121, %s122
      %p131 = scmp.eq.s32.totalorder %s27, 0
      %p132 = por %p130, %p131
      %p133 = scmp.ne.s32.totalorder %s121, %s122
      %p134 = scmp.eq.s32.totalorder %s28, 1
      %p135 = por %p133, %p134
      %p137 = scmp.ne.s32.totalorder %s122, %s136
      %p138 = scmp.eq.s32.totalorder %s28, 0
      %p139 = por %p137, %p138
      %s141 = sadd.s32 %s140, 1
      %p144 = scmp.eq.s32.totalorder %s22, 1
      %p145 = scmp.ne.s32.totalorder %s140, %s142
      %p146 = scmp.eq.s32.totalorder %s22, 0
      %p147 = por %p145, %p146
      %p148 = scmp.ne.s32.totalorder %s140, %s142
      %p149 = scmp.eq.s32.totalorder %s27, 1
      %p150 = por %p148, %p149
      %p151 = scmp.ne.s32.totalorder %s142, %s143
      %p152 = scmp.eq.s32.totalorder %s27, 0
      %p153 = por %p151, %p152
      %p154 = scmp.ne.s32.totalorder %s142, %s143
      %p155 = scmp.eq.s32.totalorder %s28, 1
      %p156 = por %p154, %p155
      %p158 = scmp.ne.s32.totalorder %s143, %s157
      %p159 = scmp.eq.s32.totalorder %s28, 0
      %p160 = por %p158, %p159
      %s162 = sadd.s32 %s161, 1
      %p165 = scmp.eq.s32.totalorder %s22, 1
      %p166 = scmp.ne.s32.totalorder %s161, %s163
      %p167 = scmp.eq.s32.totalorder %s22, 0
      %p168 = por %p166, %p167
      %p169 = scmp.ne.s32.totalorder %s161, %s163
      %p170 = scmp.eq.s32.totalorder %s27, 1
      %p171 = por %p169, %p170
      %p172 = scmp.ne.s32.totalorder %s163, %s164
      %p173 = scmp.eq.s32.totalorder %s27, 0
      %p174 = por %p172, %p173
      %p175 = scmp.ne.s32.totalorder %s163, %s164
      %p176 = scmp.eq.s32.totalorder %s28, 1
      %p177 = por %p175, %p176
      %p179 = scmp.ne.s32.totalorder %s164, %s178
      %p180 = scmp.eq.s32.totalorder %s28, 0
      %p181 = por %p179, %p180
      %s183 = sadd.s32 %s182, 1
      %p186 = scmp.eq.s32.totalorder %s22, 1
      %p187 = scmp.ne.s32.totalorder %s182, %s184
      %p188 = scmp.eq.s32.totalorder %s22, 0
      %p189 = por %p187, %p188
      %p190 = scmp.ne.s32.totalorder %s182, %s184
      %p191 = scmp.eq.s32.totalorder %s27, 1
      %p192 = por %p190, %p191
      %p193 = scmp.ne.s32.totalorder %s184, %s185
      %p194 = scmp.eq.s32.totalorder %s27, 0
      %p195 = por %p193, %p194
      %p196 = scmp.ne.s32.totalorder %s184, %s185
      %p197 = scmp.eq.s32.totalorder %s28, 1
      %p198 = por %p196, %p197
      %p200 = scmp.ne.s32.totalorder %s185, %s199
      %p201 = scmp.eq.s32.totalorder %s28, 0
      %p202 = por %p200, %p201
      %s204 = sadd.s32 %s203, 1
      %p207 = scmp.eq.s32.totalorder %s22, 1
      %p208 = scmp.ne.s32.totalorder %s203, %s205
      %p209 = scmp.eq.s32.totalorder %s22, 0
      %p210 = por %p208, %p209
      %p211 = scmp.ne.s32.totalorder %s203, %s205
      %p212 = scmp.eq.s32.totalorder %s27, 1
      %p213 = por %p211, %p212
      %p214 = scmp.ne.s32.totalorder %s205, %s206
      %p215 = scmp.eq.s32.totalorder %s27, 0
      %p216 = por %p214, %p215
      %p217 = scmp.ne.s32.totalorder %s205, %s206
      %p218 = scmp.eq.s32.totalorder %s28, 1
      %p219 = por %p217, %p218
      %p221 = scmp.ne.s32.totalorder %s206, %s220
      %p222 = scmp.eq.s32.totalorder %s28, 0
      %p223 = por %p221, %p222
      %s225 = sadd.s32 %s224, 1
      %p228 = scmp.eq.s32.totalorder %s22, 1
      %p229 = scmp.ne.s32.totalorder %s224, %s226
      %p230 = scmp.eq.s32.totalorder %s22, 0
      %p231 = por %p229, %p230
      %p232 = scmp.ne.s32.totalorder %s224, %s226
      %p233 = scmp.eq.s32.totalorder %s27, 1
      %p234 = por %p232, %p233
      %p235 = scmp.ne.s32.totalorder %s226, %s227
      %p236 = scmp.eq.s32.totalorder %s27, 0
      %p237 = por %p235, %p236
      %p238 = scmp.ne.s32.totalorder %s226, %s227
      %p239 = scmp.eq.s32.totalorder %s28, 1
      %p240 = por %p238, %p239
      %p242 = scmp.ne.s32.totalorder %s227, %s241
      %p243 = scmp.eq.s32.totalorder %s28, 0
      %p244 = por %p242, %p243
      %s246 = sadd.s32 %s245, 1
      %p249 = scmp.eq.s32.totalorder %s22, 1
      %p250 = scmp.ne.s32.totalorder %s245, %s247
      %p251 = scmp.eq.s32.totalorder %s22, 0
      %p252 = por %p250, %p251
      %p253 = scmp.ne.s32.totalorder %s245, %s247
      %p254 = scmp.eq.s32.totalorder %s27, 1
      %p255 = por %p253, %p254
      %p256 = scmp.ne.s32.totalorder %s247, %s248
      %p257 = scmp.eq.s32.totalorder %s27, 0
      %p258 = por %p256, %p257
      %p259 = scmp.ne.s32.totalorder %s247, %s248
      %p260 = scmp.eq.s32.totalorder %s28, 1
      %p261 = por %p259, %p260
      %p263 = scmp.ne.s32.totalorder %s248, %s262
      %p264 = scmp.eq.s32.totalorder %s28, 0
      %p265 = por %p263, %p264
      %s267 = sadd.s32 %s266, 1
      %p270 = scmp.eq.s32.totalorder %s22, 1
      %p271 = scmp.ne.s32.totalorder %s266, %s268
      %p272 = scmp.eq.s32.totalorder %s22, 0
      %p273 = por %p271, %p272
      %p274 = scmp.ne.s32.totalorder %s266, %s268
      %p275 = scmp.eq.s32.totalorder %s27, 1
      %p276 = por %p274, %p275
      %p277 = scmp.ne.s32.totalorder %s268, %s269
      %p278 = scmp.eq.s32.totalorder %s27, 0
      %p279 = por %p277, %p278
      %p280 = scmp.ne.s32.totalorder %s268, %s269
      %p281 = scmp.eq.s32.totalorder %s28, 1
      %p282 = por %p280, %p281
      %p284 = scmp.ne.s32.totalorder %s269, %s283
      %p285 = scmp.eq.s32.totalorder %s28, 0
      %p286 = por %p284, %p285
      %s288 = sadd.s32 %s287, 1
      %p291 = scmp.eq.s32.totalorder %s22, 1
      %p292 = scmp.ne.s32.totalorder %s287, %s289
      %p293 = scmp.eq.s32.totalorder %s22, 0
      %p294 = por %p292, %p293
      %p295 = scmp.ne.s32.totalorder %s287, %s289
      %p296 = scmp.eq.s32.totalorder %s27, 1
      %p297 = por %p295, %p296
      %p298 = scmp.ne.s32.totalorder %s289, %s290
      %p299 = scmp.eq.s32.totalorder %s27, 0
      %p300 = por %p298, %p299
      %p301 = scmp.ne.s32.totalorder %s289, %s290
      %p302 = scmp.eq.s32.totalorder %s28, 1
      %p303 = por %p301, %p302
      %p305 = scmp.ne.s32.totalorder %s290, %s304
      %p306 = scmp.eq.s32.totalorder %s28, 0
      %p307 = por %p305, %p306
      %s308 = ssub.s32 %s22, %s29
      %p309 = scmp.eq.s32.totalorder %s308, 0
      %s311 = sadd.s32 %s310, 1
      %s312 = scalar_select %p309, %s310, %s311
      %p315 = pneg %p309
      %p316 = scmp.eq.s32.totalorder %s22, 1
      %p317 = por %p315, %p316
      %p318 = scmp.ne.s32.totalorder %s310, %s313
      %p319 = scmp.eq.s32.totalorder %s22, 0
      %p320 = por %p318, %p319
      %p321 = scmp.ne.s32.totalorder %s310, %s313
      %p322 = scmp.eq.s32.totalorder %s27, 1
      %p323 = por %p321, %p322
      %p324 = scmp.ne.s32.totalorder %s313, %s314
      %p325 = scmp.eq.s32.totalorder %s27, 0
      %p326 = por %p324, %p325
      %p327 = scmp.ne.s32.totalorder %s313, %s314
      %p328 = scmp.eq.s32.totalorder %s28, 1
      %p329 = por %p327, %p328
      %p331 = scmp.ne.s32.totalorder %s314, %s330
      %p332 = scmp.eq.s32.totalorder %s28, 0
      %p333 = por %p331, %p332
      %p334 = scmp.le.s32.totalorder 1, %s22
      %p335 = scmp.lt.s32.totalorder %s22, 3
      %p336 = pnand %p334, %p335
      %p337 = pneg %p336
      // Predicated region
      $region9: #{lenet_forward.1} parent=5 // pred_check
        _
      $region10: #{lenet_forward.1} parent=5 // pred_check_branch
        %339 = sbr.rel (%p336) target = $region12
      $region11: #{lenet_forward.1} parent=5 // pred_region
        %s340 = ssub.s32 %s22, 1
        // Predicated region
        $region13: #{lenet_forward.1} parent=11 // pred_check
          %p341 = pneg %p69
        $region14: #{lenet_forward.1} parent=11 // pred_check_branch
          %343 = sbr.rel (%p341) target = $region16
        $region15: #{lenet_forward.1} parent=11 // pred_region
          _
        $region16: #{lenet_forward.1} parent=11 // pred_fallthru
          _
        // Predicated region
        $region17: #{lenet_forward.1} parent=11 // pred_check
          %p344 = pneg %p90
        $region18: #{lenet_forward.1} parent=11 // pred_check_branch
          %346 = sbr.rel (%p344) target = $region20
        $region19: #{lenet_forward.1} parent=11 // pred_region
          _
        $region20: #{lenet_forward.1} parent=11 // pred_fallthru
          _
        // Predicated region
        $region21: #{lenet_forward.1} parent=11 // pred_check
          %p347 = pneg %p111
        $region22: #{lenet_forward.1} parent=11 // pred_check_branch
          %349 = sbr.rel (%p347) target = $region24
        $region23: #{lenet_forward.1} parent=11 // pred_region
          _
        $region24: #{lenet_forward.1} parent=11 // pred_fallthru
          _
        // Predicated region
        $region25: #{lenet_forward.1} parent=11 // pred_check
          %p350 = pneg %p132
        $region26: #{lenet_forward.1} parent=11 // pred_check_branch
          %352 = sbr.rel (%p350) target = $region28
        $region27: #{lenet_forward.1} parent=11 // pred_region
          _
        $region28: #{lenet_forward.1} parent=11 // pred_fallthru
          _
        // Predicated region
        $region29: #{lenet_forward.1} parent=11 // pred_check
          %p353 = pneg %p153
        $region30: #{lenet_forward.1} parent=11 // pred_check_branch
          %355 = sbr.rel (%p353) target = $region32
        $region31: #{lenet_forward.1} parent=11 // pred_region
          _
        $region32: #{lenet_forward.1} parent=11 // pred_fallthru
          _
        // Predicated region
        $region33: #{lenet_forward.1} parent=11 // pred_check
          %p356 = pneg %p174
        $region34: #{lenet_forward.1} parent=11 // pred_check_branch
          %358 = sbr.rel (%p356) target = $region36
        $region35: #{lenet_forward.1} parent=11 // pred_region
          _
        $region36: #{lenet_forward.1} parent=11 // pred_fallthru
          _
        // Predicated region
        $region37: #{lenet_forward.1} parent=11 // pred_check
          %p359 = pneg %p195
        $region38: #{lenet_forward.1} parent=11 // pred_check_branch
          %361 = sbr.rel (%p359) target = $region40
        $region39: #{lenet_forward.1} parent=11 // pred_region
          _
        $region40: #{lenet_forward.1} parent=11 // pred_fallthru
          _
        // Predicated region
        $region41: #{lenet_forward.1} parent=11 // pred_check
          %p362 = pneg %p216
        $region42: #{lenet_forward.1} parent=11 // pred_check_branch
          %364 = sbr.rel (%p362) target = $region44
        $region43: #{lenet_forward.1} parent=11 // pred_region
          _
        $region44: #{lenet_forward.1} parent=11 // pred_fallthru
          _
        // Predicated region
        $region45: #{lenet_forward.1} parent=11 // pred_check
          %p365 = pneg %p237
        $region46: #{lenet_forward.1} parent=11 // pred_check_branch
          %367 = sbr.rel (%p365) target = $region48
        $region47: #{lenet_forward.1} parent=11 // pred_region
          _
        $region48: #{lenet_forward.1} parent=11 // pred_fallthru
          _
        // Predicated region
        $region49: #{lenet_forward.1} parent=11 // pred_check
          %p368 = pneg %p258
        $region50: #{lenet_forward.1} parent=11 // pred_check_branch
          %370 = sbr.rel (%p368) target = $region52
        $region51: #{lenet_forward.1} parent=11 // pred_region
          _
        $region52: #{lenet_forward.1} parent=11 // pred_fallthru
          _
        // Predicated region
        $region53: #{lenet_forward.1} parent=11 // pred_check
          %p371 = pneg %p279
        $region54: #{lenet_forward.1} parent=11 // pred_check_branch
          %373 = sbr.rel (%p371) target = $region56
        $region55: #{lenet_forward.1} parent=11 // pred_region
          _
        $region56: #{lenet_forward.1} parent=11 // pred_fallthru
          _
        // Predicated region
        $region57: #{lenet_forward.1} parent=11 // pred_check
          %p374 = pneg %p300
        $region58: #{lenet_forward.1} parent=11 // pred_check_branch
          %376 = sbr.rel (%p374) target = $region60
        $region59: #{lenet_forward.1} parent=11 // pred_region
          _
        $region60: #{lenet_forward.1} parent=11 // pred_fallthru
          _
      $region12: #{lenet_forward.1} parent=5 // pred_fallthru
        _
      %p377 = scmp.lt.s32.totalorder %s22, 2
      // Predicated region
      $region61: #{lenet_forward.1} parent=5 // pred_check
        %p378 = pneg %p377
      $region62: #{lenet_forward.1} parent=5 // pred_check_branch
        %380 = sbr.rel (%p378) target = $region64
      $region63: #{lenet_forward.1} parent=5 // pred_region
        // Predicated region
        $region65: #{lenet_forward.1} parent=63 // pred_check
          %p381 = pneg %p42
        $region66: #{lenet_forward.1} parent=63 // pred_check_branch
          %383 = sbr.rel (%p381) target = $region68
        $region67: #{lenet_forward.1} parent=63 // pred_region
          %s384 = smul.u32 4, %s22
          %p385 = scmp.lt.s32.totalorder %s384, 7
          %s386 = scalar_select %p385, %s384, 7
          %s387 = smul.addr %s386, 4
          %s388 = smul.addr %s387, 4
          %s389 = scalar_lea.vmem %s0, %s388
          %s390 = smul.u32 4, %s22
        $region68: #{lenet_forward.1} parent=63 // pred_fallthru
          _
      $region64: #{lenet_forward.1} parent=5 // pred_fallthru
        _
      %p391 = scmp.le.s32.totalorder 1, %s22
      %p392 = scmp.lt.s32.totalorder %s22, 3
      %p393 = pnand %p391, %p392
      %p394 = pneg %p393
      // Predicated region
      $region69: #{lenet_forward.1} parent=5 // pred_check
        _
      $region70: #{lenet_forward.1} parent=5 // pred_check_branch
        %396 = sbr.rel (%p393) target = $region72
      $region71: #{lenet_forward.1} parent=5 // pred_region
        %s397 = ssub.s32 %s22, 1
        %s398 = smul.u32 4, %s27
        %p399 = scmp.lt.s32.totalorder %s398, 7
        %s400 = scalar_select %p399, %s398, 7
        %s401 = smul.addr %s400, 4
        %s402 = smul.addr %s401, 4
        %s403 = scalar_lea.vmem %s0, %s402
        %p404 = pneg %p48
        %p405 = pneg %p45
        %p406 = pneg %p69
        %p407 = pneg %p66
        %p408 = pneg %p90
        %p409 = pneg %p87
        %p410 = pneg %p111
        %p411 = pneg %p108
        %p412 = pneg %p132
        %p413 = pneg %p129
        %p414 = pneg %p153
        %p415 = pneg %p150
        %p416 = pneg %p174
        %p417 = pneg %p171
        %p418 = pneg %p195
        %p419 = pneg %p192
        %p420 = pneg %p216
        %p421 = pneg %p213
        %p422 = pneg %p237
        %p423 = pneg %p234
        %p424 = pneg %p258
        %p425 = pneg %p255
        %p426 = pneg %p279
        %p427 = pneg %p276
        %p428 = pneg %p300
        %p429 = pneg %p297
        %p430 = pneg %p326
        %p431 = pneg %p323
        %s432 = sand.u32 %s313, 1
        %s433 = scalar_lea.sflag [#allocation3], %s432
        %s434 = sand.u32 %s313, 1
        %s435 = scalar_lea.vmem [#allocation2], %s434
        %s436 = smul.u32 4, %s27
        %p437 = scmp.lt.s32.totalorder %s436, 7
        %s438 = scalar_select %p437, %s436, 7
        %s439 = smul.addr %s438, 4
        %s440 = smul.addr %s439, 4
        %s441 = scalar_lea.vmem %s0, %s440
        %s442 = smul.u32 4, %s27
        %v444 = vld [vmem:[%s441] sm:$0xff]
        %v445 = vld [vmem:[%s441 + $0x8] sm:$0xff]
        %v446 = vld [vmem:[%s441 + $0x10] sm:$0xff]
        %v447 = vld [vmem:[%s441 + $0x18] sm:$0xff]
        %v448 = vld [vmem:[%s441 + $0x20] sm:$0xff]
        %v449 = vld [vmem:[%s441 + $0x28] sm:$0xff]
        %v450 = vld [vmem:[%s441 + $0x30] sm:$0xff]
        %v451 = vld [vmem:[%s441 + $0x38] sm:$0xff]
        %v452 = vld [vmem:[%s1] sm:$0xff]
        %v453 = vld [vmem:[%s1 + $0x8] sm:$0xff]
        %v454 = vld [vmem:[%s1 + $0x10] sm:$0xff]
        %v455 = vld [vmem:[%s1 + $0x18] sm:$0xff]
        %v456 = vld [vmem:[%s1 + $0x20] sm:$0xff]
        %v457 = vld [vmem:[%s1 + $0x28] sm:$0xff]
        %v458 = vld [vmem:[%s1 + $0x30] sm:$0xff]
        %v459 = vld [vmem:[%s1 + $0x38] sm:$0xff]
        %v460 = vld [vmem:[%s1 + $0x40] sm:$0xff]
        %v461 = vld [vmem:[%s1 + $0x48] sm:$0xff]
        %v462 = vld [vmem:[%s1 + $0x50] sm:$0xff]
        %v463 = vld [vmem:[%s1 + $0x58] sm:$0xff]
        %v464 = vld [vmem:[%s1 + $0x60] sm:$0xff]
        %v465 = vld [vmem:[%s1 + $0x68] sm:$0xff]
        %v466 = vld [vmem:[%s1 + $0x70] sm:$0xff]
        %v467 = vld [vmem:[%s1 + $0x78] sm:$0xff]
        %v468 = vld [vmem:[%s1 + $0x80] sm:$0xff]
        %v469 = vld [vmem:[%s1 + $0x88] sm:$0xff]
        %v470 = vld [vmem:[%s1 + $0x90] sm:$0xff]
        %v471 = vld [vmem:[%s1 + $0x98] sm:$0xff]
        %v472 = vld [vmem:[%s1 + $0xa0] sm:$0xff]
        %v473 = vld [vmem:[%s1 + $0xa8] sm:$0xff]
        %v474 = vld [vmem:[%s1 + $0xb0] sm:$0xff]
        %v475 = vld [vmem:[%s1 + $0xb8] sm:$0xff]
        %v476 = vld [vmem:[%s1 + $0xc0] sm:$0xff]
        %v477 = vld [vmem:[%s1 + $0xc8] sm:$0xff]
        %v478 = vld [vmem:[%s1 + $0xd0] sm:$0xff]
        %v479 = vld [vmem:[%s1 + $0xd8] sm:$0xff]
        %v480 = vld [vmem:[%s1 + $0xe0] sm:$0xff]
        %v481 = vld [vmem:[%s1 + $0xe8] sm:$0xff]
        %v482 = vld [vmem:[%s1 + $0xf0] sm:$0xff]
        %v483 = vld [vmem:[%s1 + $0xf8] sm:$0xff]
        %v484 = vld [vmem:[%s1 + $0x100] sm:$0xff]
        %v485 = vld [vmem:[%s1 + $0x108] sm:$0xff]
        %v486 = vld [vmem:[%s1 + $0x110] sm:$0xff]
        %v487 = vld [vmem:[%s1 + $0x118] sm:$0xff]
        %v488 = vld [vmem:[%s1 + $0x120] sm:$0xff]
        %v489 = vld [vmem:[%s1 + $0x128] sm:$0xff]
        %v490 = vld [vmem:[%s1 + $0x130] sm:$0xff]
        %v491 = vld [vmem:[%s1 + $0x138] sm:$0xff]
        %v492 = vld [vmem:[%s1 + $0x140] sm:$0xff]
        %v493 = vld [vmem:[%s1 + $0x148] sm:$0xff]
        %v494 = vld [vmem:[%s1 + $0x150] sm:$0xff]
        %v495 = vld [vmem:[%s1 + $0x158] sm:$0xff]
        %v496 = vld [vmem:[%s1 + $0x160] sm:$0xff]
        %v497 = vld [vmem:[%s1 + $0x168] sm:$0xff]
        %v498 = vld [vmem:[%s1 + $0x170] sm:$0xff]
        %v499 = vld [vmem:[%s1 + $0x178] sm:$0xff]
        %v500 = vld [vmem:[%s1 + $0x180] sm:$0xff]
        %v501 = vld [vmem:[%s1 + $0x188] sm:$0xff]
        %v502 = vld [vmem:[%s1 + $0x190] sm:$0xff]
        %v503 = vld [vmem:[%s1 + $0x198] sm:$0xff]
        %v504 = vld [vmem:[%s1 + $0x1a0] sm:$0xff]
        %v505 = vld [vmem:[%s1 + $0x1a8] sm:$0xff]
        %v506 = vld [vmem:[%s1 + $0x1b0] sm:$0xff]
        %v507 = vld [vmem:[%s1 + $0x1b8] sm:$0xff]
        %v508 = vld [vmem:[%s1 + $0x1c0] sm:$0xff]
        %v509 = vld [vmem:[%s1 + $0x1c8] sm:$0xff]
        %v510 = vld [vmem:[%s1 + $0x1d0] sm:$0xff]
        %v511 = vld [vmem:[%s1 + $0x1d8] sm:$0xff]
        %v512 = vld [vmem:[%s2] sm:$0x3]
        %v514 = vlaneseq
        %v515 = vshrl.u32 %v514, 7
        %v516 = vsub.s32 0, %v515
        %v517 = vrot.slane %v512, %v516
        %v518 = vlaneseq
        %v519 = vshrl.u32 %v518, 7
        %v520 = vsub.s32 1, %v519
        %v521 = vrot.slane %v512, %v520
        %v532 = vunpack.c.l.b16 %v444
        %v533 = vunpack.c.h.b16 %v444
        %v534 = vunpack.c.l.b16 %v445
        %v535 = vunpack.c.h.b16 %v445
        %v536 = vunpack.c.l.b16 %v446
        %v537 = vunpack.c.h.b16 %v446
        %v538 = vunpack.c.l.b16 %v447
        %v539 = vunpack.c.h.b16 %v447
        %v540 = vunpack.c.l.b16 %v448
        %v541 = vunpack.c.h.b16 %v448
        %v542 = vunpack.c.l.b16 %v449
        %v543 = vunpack.c.h.b16 %v449
        %v544 = vunpack.c.l.b16 %v450
        %v545 = vunpack.c.h.b16 %v450
        %v546 = vunpack.c.l.b16 %v451
        %v547 = vunpack.c.h.b16 %v451
        %v548 = vpack.c.b16 %v536, %v532
        %v549 = vpack.c.b16 %v537, %v533
        %v550 = vpack.c.b16 %v538, %v534
        %v551 = vpack.c.b16 %v539, %v535
        %v552 = vpack.c.b16 %v544, %v540
        %v553 = vpack.c.b16 %v545, %v541
        %v554 = vpack.c.b16 %v546, %v542
        %v555 = vpack.c.b16 %v547, %v543
        %v622 = vunpack.c.l.b16 %v452
        %v623 = vunpack.c.h.b16 %v452
        %v624 = vunpack.c.l.b16 %v453
        %v625 = vunpack.c.h.b16 %v453
        %v626 = vunpack.c.l.b16 %v454
        %v627 = vunpack.c.h.b16 %v454
        %v628 = vunpack.c.l.b16 %v455
        %v629 = vunpack.c.h.b16 %v455
        %v630 = vunpack.c.l.b16 %v456
        %v631 = vunpack.c.h.b16 %v456
        %v632 = vunpack.c.l.b16 %v457
        %v633 = vunpack.c.h.b16 %v457
        %v634 = vunpack.c.l.b16 %v458
        %v635 = vunpack.c.h.b16 %v458
        %v636 = vunpack.c.l.b16 %v459
        %v637 = vunpack.c.h.b16 %v459
        %v638 = vunpack.c.l.b16 %v460
        %v639 = vunpack.c.h.b16 %v460
        %v640 = vunpack.c.l.b16 %v461
        %v641 = vunpack.c.h.b16 %v461
        %v642 = vunpack.c.l.b16 %v462
        %v643 = vunpack.c.h.b16 %v462
        %v644 = vunpack.c.l.b16 %v463
        %v645 = vunpack.c.h.b16 %v463
        %v646 = vunpack.c.l.b16 %v464
        %v647 = vunpack.c.h.b16 %v464
        %v648 = vunpack.c.l.b16 %v465
        %v649 = vunpack.c.h.b16 %v465
        %v650 = vunpack.c.l.b16 %v466
        %v651 = vunpack.c.h.b16 %v466
        %v652 = vunpack.c.l.b16 %v467
        %v653 = vunpack.c.h.b16 %v467
        %v654 = vunpack.c.l.b16 %v468
        %v655 = vunpack.c.h.b16 %v468
        %v656 = vunpack.c.l.b16 %v469
        %v657 = vunpack.c.h.b16 %v469
        %v658 = vunpack.c.l.b16 %v470
        %v659 = vunpack.c.h.b16 %v470
        %v660 = vunpack.c.l.b16 %v471
        %v661 = vunpack.c.h.b16 %v471
        %v662 = vunpack.c.l.b16 %v472
        %v663 = vunpack.c.h.b16 %v472
        %v664 = vunpack.c.l.b16 %v473
        %v665 = vunpack.c.h.b16 %v473
        %v666 = vunpack.c.l.b16 %v474
        %v667 = vunpack.c.h.b16 %v474
        %v668 = vunpack.c.l.b16 %v475
        %v669 = vunpack.c.h.b16 %v475
        %v670 = vunpack.c.l.b16 %v476
        %v671 = vunpack.c.h.b16 %v476
        %v672 = vunpack.c.l.b16 %v477
        %v673 = vunpack.c.h.b16 %v477
        %v674 = vunpack.c.l.b16 %v478
        %v675 = vunpack.c.h.b16 %v478
        %v676 = vunpack.c.l.b16 %v479
        %v677 = vunpack.c.h.b16 %v479
        %v678 = vunpack.c.l.b16 %v480
        %v679 = vunpack.c.h.b16 %v480
        %v680 = vunpack.c.l.b16 %v481
        %v681 = vunpack.c.h.b16 %v481
        %v682 = vunpack.c.l.b16 %v482
        %v683 = vunpack.c.h.b16 %v482
        %v684 = vunpack.c.l.b16 %v483
        %v685 = vunpack.c.h.b16 %v483
        %v686 = vunpack.c.l.b16 %v484
        %v687 = vunpack.c.h.b16 %v484
        %v688 = vunpack.c.l.b16 %v485
        %v689 = vunpack.c.h.b16 %v485
        %v690 = vunpack.c.l.b16 %v486
        %v691 = vunpack.c.h.b16 %v486
        %v692 = vunpack.c.l.b16 %v487
        %v693 = vunpack.c.h.b16 %v487
        %v694 = vunpack.c.l.b16 %v488
        %v695 = vunpack.c.h.b16 %v488
        %v696 = vunpack.c.l.b16 %v489
        %v697 = vunpack.c.h.b16 %v489
        %v698 = vunpack.c.l.b16 %v490
        %v699 = vunpack.c.h.b16 %v490
        %v700 = vunpack.c.l.b16 %v491
        %v701 = vunpack.c.h.b16 %v491
        %v702 = vunpack.c.l.b16 %v492
        %v703 = vunpack.c.h.b16 %v492
        %v704 = vunpack.c.l.b16 %v493
        %v705 = vunpack.c.h.b16 %v493
        %v706 = vunpack.c.l.b16 %v494
        %v707 = vunpack.c.h.b16 %v494
        %v708 = vunpack.c.l.b16 %v495
        %v709 = vunpack.c.h.b16 %v495
        %v710 = vunpack.c.l.b16 %v496
        %v711 = vunpack.c.h.b16 %v496
        %v712 = vunpack.c.l.b16 %v497
        %v713 = vunpack.c.h.b16 %v497
        %v714 = vunpack.c.l.b16 %v498
        %v715 = vunpack.c.h.b16 %v498
        %v716 = vunpack.c.l.b16 %v499
        %v717 = vunpack.c.h.b16 %v499
        %v718 = vunpack.c.l.b16 %v500
        %v719 = vunpack.c.h.b16 %v500
        %v720 = vunpack.c.l.b16 %v501
        %v721 = vunpack.c.h.b16 %v501
        %v722 = vunpack.c.l.b16 %v502
        %v723 = vunpack.c.h.b16 %v502
        %v724 = vunpack.c.l.b16 %v503
        %v725 = vunpack.c.h.b16 %v503
        %v726 = vunpack.c.l.b16 %v504
        %v727 = vunpack.c.h.b16 %v504
        %v728 = vunpack.c.l.b16 %v505
        %v729 = vunpack.c.h.b16 %v505
        %v730 = vunpack.c.l.b16 %v506
        %v731 = vunpack.c.h.b16 %v506
        %v732 = vunpack.c.l.b16 %v507
        %v733 = vunpack.c.h.b16 %v507
        %v734 = vunpack.c.l.b16 %v508
        %v735 = vunpack.c.h.b16 %v508
        %v736 = vunpack.c.l.b16 %v509
        %v737 = vunpack.c.h.b16 %v509
        %v738 = vunpack.c.l.b16 %v510
        %v739 = vunpack.c.h.b16 %v510
        %v740 = vunpack.c.l.b16 %v511
        %v741 = vunpack.c.h.b16 %v511
        %v742 = vpack.c.b16 %v624, %v622
        %v743 = vpack.c.b16 %v625, %v623
        %v744 = vpack.c.b16 %v628, %v626
        %v745 = vpack.c.b16 %v629, %v627
        %v746 = vpack.c.b16 %v632, %v630
        %v747 = vpack.c.b16 %v633, %v631
        %v748 = vpack.c.b16 %v636, %v634
        %v749 = vpack.c.b16 %v637, %v635
        %v750 = vpack.c.b16 %v640, %v638
        %v751 = vpack.c.b16 %v641, %v639
        %v752 = vpack.c.b16 %v644, %v642
        %v753 = vpack.c.b16 %v645, %v643
        %v754 = vpack.c.b16 %v648, %v646
        %v755 = vpack.c.b16 %v649, %v647
        %v756 = vpack.c.b16 %v652, %v650
        %v757 = vpack.c.b16 %v653, %v651
        %v758 = vpack.c.b16 %v656, %v654
        %v759 = vpack.c.b16 %v657, %v655
        %v760 = vpack.c.b16 %v660, %v658
        %v761 = vpack.c.b16 %v661, %v659
        %v762 = vpack.c.b16 %v664, %v662
        %v763 = vpack.c.b16 %v665, %v663
        %v764 = vpack.c.b16 %v668, %v666
        %v765 = vpack.c.b16 %v669, %v667
        %v766 = vpack.c.b16 %v672, %v670
        %v767 = vpack.c.b16 %v673, %v671
        %v768 = vpack.c.b16 %v676, %v674
        %v769 = vpack.c.b16 %v677, %v675
        %v770 = vpack.c.b16 %v680, %v678
        %v771 = vpack.c.b16 %v681, %v679
        %v772 = vpack.c.b16 %v684, %v682
        %v773 = vpack.c.b16 %v685, %v683
        %v774 = vpack.c.b16 %v688, %v686
        %v775 = vpack.c.b16 %v689, %v687
        %v776 = vpack.c.b16 %v692, %v690
        %v777 = vpack.c.b16 %v693, %v691
        %v778 = vpack.c.b16 %v696, %v694
        %v779 = vpack.c.b16 %v697, %v695
        %v780 = vpack.c.b16 %v700, %v698
        %v781 = vpack.c.b16 %v701, %v699
        %v782 = vpack.c.b16 %v704, %v702
        %v783 = vpack.c.b16 %v705, %v703
        %v784 = vpack.c.b16 %v708, %v706
        %v785 = vpack.c.b16 %v709, %v707
        %v786 = vpack.c.b16 %v712, %v710
        %v787 = vpack.c.b16 %v713, %v711
        %v788 = vpack.c.b16 %v716, %v714
        %v789 = vpack.c.b16 %v717, %v715
        %v790 = vpack.c.b16 %v720, %v718
        %v791 = vpack.c.b16 %v721, %v719
        %v792 = vpack.c.b16 %v724, %v722
        %v793 = vpack.c.b16 %v725, %v723
        %v794 = vpack.c.b16 %v728, %v726
        %v795 = vpack.c.b16 %v729, %v727
        %v796 = vpack.c.b16 %v732, %v730
        %v797 = vpack.c.b16 %v733, %v731
        %v798 = vpack.c.b16 %v736, %v734
        %v799 = vpack.c.b16 %v737, %v735
        %v800 = vpack.c.b16 %v740, %v738
        %v801 = vpack.c.b16 %v741, %v739
        %vm862 = vcmask 785408
        %v864 = vsel %vm862, %v551, 0
        %v867 = vsel %vm862, %v555, 0
        %869 = vmatprep.subr.bf16.mxu0 %v757
        %870 = vmatpush1.bf16.msra.mxu0 %v756
        %871 = vmatprep.subr.bf16.mxu0 %v755
        %872 = vmatpush1.bf16.msra.mxu0 %v754
        %873 = vmatprep.subr.bf16.mxu0 %v753
        %874 = vmatpush1.bf16.msra.mxu0 %v752
        %875 = vmatprep.subr.bf16.mxu0 %v751
        %876 = vmatpush1.bf16.msra.mxu0 %v750
        %877 = vmatprep.subr.bf16.mxu0 %v749
        %878 = vmatpush1.bf16.msra.mxu0 %v748
        %879 = vmatprep.subr.bf16.mxu0 %v747
        %880 = vmatpush1.bf16.msra.mxu0 %v746
        %881 = vmatprep.subr.bf16.mxu0 %v745
        %882 = vmatpush1.bf16.msra.mxu0 %v744
        %883 = vmatprep.subr.bf16.mxu0 %v743
        %884 = vmatpush1.bf16.msra.mxu0 %v742
        %885 = vmatprep.subr.bf16.mxu0 %v773
        %886 = vmatpush2.bf16.msra.mxu0 %v772
        %887 = vmatprep.subr.bf16.mxu0 %v771
        %888 = vmatpush2.bf16.msra.mxu0 %v770
        %889 = vmatprep.subr.bf16.mxu0 %v769
        %890 = vmatpush2.bf16.msra.mxu0 %v768
        %891 = vmatprep.subr.bf16.mxu0 %v767
        %892 = vmatpush2.bf16.msra.mxu0 %v766
        %893 = vmatprep.subr.bf16.mxu0 %v765
        %894 = vmatpush2.bf16.msra.mxu0 %v764
        %895 = vmatprep.subr.bf16.mxu0 %v763
        %896 = vmatpush2.bf16.msra.mxu0 %v762
        %897 = vmatprep.subr.bf16.mxu0 %v761
        %898 = vmatpush2.bf16.msra.mxu0 %v760
        %899 = vmatprep.subr.bf16.mxu0 %v759
        %900 = vmatpush2.bf16.msra.mxu0 %v758
        %901 = vmatprep.mubr.bf16.mxu0 %v549
        %902 = vmatmul.mubr.bf16.gmra.mxu0 %v548
        %v903 = vpop.f32.mrf.mxu0
        %v904 = vadd.f32 %v517, %v903
        %v905 = vpop.f32.mrf.mxu0
        %v906 = vadd.f32 %v521, %v905
        %v907 = vpop.f32.mrf.mxu0
        %v908 = vadd.f32 %v517, %v907
        %v909 = vpop.f32.mrf.mxu0
        %v910 = vadd.f32 %v521, %v909
        %911 = vmatprep.mubr.bf16.mxu0 %v553
        %912 = vmatmul.mubr.bf16.gmra.mxu0 %v552
        %v913 = vpop.f32.mrf.mxu0
        %v914 = vadd.f32 %v517, %v913
        %v915 = vpop.f32.mrf.mxu0
        %v916 = vadd.f32 %v521, %v915
        %v917 = vpop.f32.mrf.mxu0
        %v918 = vadd.f32 %v517, %v917
        %v919 = vpop.f32.mrf.mxu0
        %v920 = vadd.f32 %v521, %v919
        %921 = vdwg.mxu0
        %922 = vmatprep.subr.bf16.mxu0 %v789
        %923 = vmatpush1.bf16.msra.mxu0 %v788
        %924 = vmatprep.subr.bf16.mxu0 %v787
        %925 = vmatpush1.bf16.msra.mxu0 %v786
        %926 = vmatprep.subr.bf16.mxu0 %v785
        %927 = vmatpush1.bf16.msra.mxu0 %v784
        %928 = vmatprep.subr.bf16.mxu0 %v783
        %929 = vmatpush1.bf16.msra.mxu0 %v782
        %930 = vmatprep.subr.bf16.mxu0 %v781
        %931 = vmatpush1.bf16.msra.mxu0 %v780
        %932 = vmatprep.subr.bf16.mxu0 %v779
        %933 = vmatpush1.bf16.msra.mxu0 %v778
        %934 = vmatprep.subr.bf16.mxu0 %v777
        %935 = vmatpush1.bf16.msra.mxu0 %v776
        %936 = vmatprep.subr.bf16.mxu0 %v775
        %937 = vmatpush1.bf16.msra.mxu0 %v774
        %938 = vmatprep.subr.bf16.mxu0 0
        %939 = vmatpush2.bf16.msra.mxu0 0
        %940 = vmatprep.subr.bf16.mxu0 0
        %941 = vmatpush2.bf16.msra.mxu0 0
        %942 = vmatprep.subr.bf16.mxu0 %v801
        %943 = vmatpush2.bf16.msra.mxu0 %v800
        %944 = vmatprep.subr.bf16.mxu0 %v799
        %945 = vmatpush2.bf16.msra.mxu0 %v798
        %946 = vmatprep.subr.bf16.mxu0 %v797
        %947 = vmatpush2.bf16.msra.mxu0 %v796
        %948 = vmatprep.subr.bf16.mxu0 %v795
        %949 = vmatpush2.bf16.msra.mxu0 %v794
        %950 = vmatprep.subr.bf16.mxu0 %v793
        %951 = vmatpush2.bf16.msra.mxu0 %v792
        %952 = vmatprep.subr.bf16.mxu0 %v791
        %953 = vmatpush2.bf16.msra.mxu0 %v790
        %954 = vmatprep.mubr.bf16.mxu0 %v864
        %955 = vmatmul.mubr.bf16.gmra.mxu0 %v550
        %v956 = vpop.f32.mrf.mxu0
        %v957 = vadd.f32 %v904, %v956
        %v958 = vpop.f32.mrf.mxu0
        %v959 = vadd.f32 %v906, %v958
        %v960 = vpop.f32.mrf.mxu0
        %v961 = vadd.f32 %v908, %v960
        %v962 = vpop.f32.mrf.mxu0
        %v963 = vadd.f32 %v910, %v962
        %964 = vmatprep.mubr.bf16.mxu0 %v867
        %965 = vmatmul.mubr.bf16.gmra.mxu0 %v554
        %v966 = vpop.f32.mrf.mxu0
        %v967 = vadd.f32 %v914, %v966
        %v968 = vpop.f32.mrf.mxu0
        %v969 = vadd.f32 %v916, %v968
        %v970 = vpop.f32.mrf.mxu0
        %v971 = vadd.f32 %v918, %v970
        %v972 = vpop.f32.mrf.mxu0
        %v973 = vadd.f32 %v920, %v972
        %974 = vdwg.mxu0
        %v975 = vmax.f32 %v957, 0.0
        %v976 = vmax.f32 %v959, 0.0
        %v977 = vmax.f32 %v961, 0.0
        %v978 = vmax.f32 %v963, 0.0
        %v979 = vmax.f32 %v967, 0.0
        %v980 = vmax.f32 %v969, 0.0
        %v981 = vmax.f32 %v971, 0.0
        %v982 = vmax.f32 %v973, 0.0
        %vm991 = vcmask 1046528
        %v992 = vrot.slane %v975, 1
        %v993 = vrot.slane %v977, 1
        %v994 = vsel %vm991, %v992, %v993
        %v995 = vrot.slane %v976, 1
        %v996 = vrot.slane %v978, 1
        %v997 = vsel %vm991, %v995, %v996
        %v998 = vrot.slane %v979, 1
        %v999 = vsel %vm991, %v993, %v998
        %v1000 = vrot.slane %v980, 1
        %v1001 = vsel %vm991, %v996, %v1000
        %v1002 = vrot.slane %v981, 1
        %v1003 = vsel %vm991, %v998, %v1002
        %v1004 = vrot.slane %v982, 1
        %v1005 = vsel %vm991, %v1000, %v1004
        %v1014 = vmax.f32 %v975, %v994
        %v1015 = vmax.f32 %v976, %v997
        %v1016 = vmax.f32 %v977, %v999
        %v1017 = vmax.f32 %v978, %v1001
        %v1018 = vmax.f32 %v979, %v1003
        %v1019 = vmax.f32 %v980, %v1005
        %v1020 = vmax.f32 %v981, %v1002
        %v1021 = vmax.f32 %v982, %v1004
        %1030 = vrot.lane.b32.xlu0 %v1014, 122
        %v1031 = vpop.permute.xlu0 %1030
        %1032 = vrot.lane.b32.xlu0 %v1015, 122
        %v1033 = vpop.permute.xlu0 %1032
        %1034 = vrot.lane.b32.xlu0 %v1016, 122
        %v1035 = vpop.permute.xlu0 %1034
        %1036 = vrot.lane.b32.xlu0 %v1017, 122
        %v1037 = vpop.permute.xlu0 %1036
        %1038 = vrot.lane.b32.xlu0 %v1018, 122
        %v1039 = vpop.permute.xlu0 %1038
        %1040 = vrot.lane.b32.xlu0 %v1019, 122
        %v1041 = vpop.permute.xlu0 %1040
        %1042 = vrot.lane.b32.xlu0 %v1020, 122
        %v1043 = vpop.permute.xlu0 %1042
        %1044 = vrot.lane.b32.xlu0 %v1021, 122
        %v1045 = vpop.permute.xlu0 %1044
        %vm1046 = vcmask 998400
        %v1047 = vsel %vm1046, %v1031, %v1033
        %v1048 = vsel %vm1046, %v1035, %v1037
        %v1049 = vsel %vm1046, %v1039, %v1041
        %v1050 = vsel %vm1046, %v1043, %v1045
        %v1059 = vmax.f32 %v1014, %v1047
        %v1060 = vmax.f32 %v1015, %v1033
        %v1061 = vmax.f32 %v1016, %v1048
        %v1062 = vmax.f32 %v1017, %v1037
        %v1063 = vmax.f32 %v1018, %v1049
        %v1064 = vmax.f32 %v1019, %v1041
        %v1065 = vmax.f32 %v1020, %v1050
        %v1066 = vmax.f32 %v1021, %v1045
        %v1067 = vld [vmem:[%s3] sm:$0xf]
        %v1068 = vld [vmem:[%s3 + $0x4] sm:$0x7]
        %v1069 = vpack.c.bf16 %v1061, %v1059
        %v1070 = vpack.c.bf16 %v1062, %v1060
        %v1071 = vpack.c.bf16 %v1065, %v1063
        %v1072 = vpack.c.bf16 %v1066, %v1064
        %v1075 = vunpack.c.l.b16 %v1067
        %v1076 = vunpack.c.l.b16 %v1068
        %v1077 = vpack.c.b16 %v1076, %v1075
        %vm1078 = vcmask 252928
        %v1080 = vsel %vm1078, %v1077, 0
        %vm1082 = vcmask 1047552
        %v1083 = vsel %vm991, 4294967295, 65535
        %v1084 = vsel %vm1082, %v1083, 0
        %v1086 = vand.u32 %v1071, %v1084
        %v1089 = vand.u32 %v1072, %v1084
        %1091 = vmatprep.subr.bf16.mxu0 0
        %1092 = vmatpush1.bf16.msra.mxu0 0
        %1093 = vmatprep.subr.bf16.mxu0 0
        %1094 = vmatpush1.bf16.msra.mxu0 0
        %1095 = vmatprep.subr.bf16.mxu0 0
        %1096 = vmatpush1.bf16.msra.mxu0 0
        %1097 = vmatprep.subr.bf16.mxu0 0
        %1098 = vmatpush1.bf16.msra.mxu0 0
        %1099 = vmatprep.subr.bf16.mxu0 0
        %1100 = vmatpush1.bf16.msra.mxu0 0
        %1101 = vmatprep.subr.bf16.mxu0 0
        %1102 = vmatpush1.bf16.msra.mxu0 0
        %1103 = vmatprep.subr.bf16.mxu0 %v1089
        %1104 = vmatpush1.bf16.msra.mxu0 %v1086
        %1105 = vmatprep.subr.bf16.mxu0 %v1070
        %1106 = vmatpush1.bf16.msra.mxu0 %v1069
        %1107 = vmatprep.subr.bf16.mxu0 0
        %1108 = vmatpush2.bf16.msra.mxu0 0
        %1109 = vmatprep.subr.bf16.mxu0 0
        %1110 = vmatpush2.bf16.msra.mxu0 0
        %1111 = vmatprep.subr.bf16.mxu0 0
        %1112 = vmatpush2.bf16.msra.mxu0 0
        %1113 = vmatprep.subr.bf16.mxu0 0
        %1114 = vmatpush2.bf16.msra.mxu0 0
        %1115 = vmatprep.subr.bf16.mxu0 0
        %1116 = vmatpush2.bf16.msra.mxu0 0
        %1117 = vmatprep.subr.bf16.mxu0 0
        %1118 = vmatpush2.bf16.msra.mxu0 0
        %1119 = vmatprep.subr.bf16.mxu0 0
        %1120 = vmatpush2.bf16.msra.mxu0 0
        %1121 = vmatprep.subr.bf16.mxu0 0
        %1122 = vmatpush2.bf16.msra.mxu0 0
        %1123 = vmatprep.mubr.bf16.mxu0 0
        %1124 = vmatmul.mubr.bf16.gmra.mxu0 %v1080
        %v1125 = vpop.f32.mrf.mxu0
        %v1126 = vadd.f32 0.0, %v1125
        %v1127 = vpop.f32.mrf.mxu0
        %v1128 = vadd.f32 0.0, %v1127
        %v1129 = vpop.f32.mrf.mxu0
        %v1130 = vadd.f32 0.0, %v1129
        %v1131 = vpop.f32.mrf.mxu0
        %v1132 = vadd.f32 0.0, %v1131
        %1133 = vdwg.mxu0
        %v1134 = vpack.c.bf16 %v1130, %v1126
        %v1135 = vpack.c.bf16 %v1132, %v1128
        %v1136 = vld [vmem:[%s4] sm:$0xff]
        %v1137 = vld [vmem:[%s4 + $0x8] sm:$0xff]
        %v1138 = vld [vmem:[%s4 + $0x10] sm:$0xff]
        %v1139 = vld [vmem:[%s4 + $0x18] sm:$0xff]
        %v1140 = vld [vmem:[%s4 + $0x20] sm:$0xff]
        %v1141 = vld [vmem:[%s4 + $0x28] sm:$0xff]
        %v1142 = vld [vmem:[%s4 + $0x30] sm:$0xff]
        %v1143 = vld [vmem:[%s4 + $0x38] sm:$0xff]
        %v1144 = vld [vmem:[%s4 + $0x40] sm:$0xff]
        %v1145 = vld [vmem:[%s4 + $0x48] sm:$0xff]
        %v1146 = vld [vmem:[%s4 + $0x50] sm:$0xff]
        %v1147 = vld [vmem:[%s4 + $0x58] sm:$0xff]
        %v1148 = vld [vmem:[%s4 + $0x60] sm:$0xff]
        %v1149 = vld [vmem:[%s4 + $0x68] sm:$0xff]
        %v1150 = vld [vmem:[%s4 + $0x70] sm:$0xff]
        %v1151 = vld [vmem:[%s4 + $0x78] sm:$0xff]
        %v1152 = vld [vmem:[%s4 + $0x80] sm:$0xff]
        %v1153 = vld [vmem:[%s4 + $0x88] sm:$0xff]
        %v1154 = vld [vmem:[%s4 + $0x90] sm:$0xff]
        %v1155 = vld [vmem:[%s4 + $0x98] sm:$0xff]
        %v1156 = vld [vmem:[%s4 + $0xa0] sm:$0x11]
        %s1157 = scalar_lea.vmem %s4, 168
        %v1158 = vld [vmem:[%s1157] sm:$0xff]
        %v1159 = vld [vmem:[%s1157 + $0x8] sm:$0xff]
        %v1160 = vld [vmem:[%s1157 + $0x10] sm:$0xff]
        %v1161 = vld [vmem:[%s1157 + $0x18] sm:$0xff]
        %v1162 = vld [vmem:[%s1157 + $0x20] sm:$0xff]
        %v1163 = vld [vmem:[%s1157 + $0x28] sm:$0xff]
        %v1164 = vld [vmem:[%s1157 + $0x30] sm:$0xff]
        %v1165 = vld [vmem:[%s1157 + $0x38] sm:$0xff]
        %v1166 = vld [vmem:[%s1157 + $0x40] sm:$0xff]
        %v1167 = vld [vmem:[%s1157 + $0x48] sm:$0xff]
        %v1168 = vld [vmem:[%s1157 + $0x50] sm:$0xff]
        %v1169 = vld [vmem:[%s1157 + $0x58] sm:$0xff]
        %v1170 = vld [vmem:[%s1157 + $0x60] sm:$0xff]
        %v1171 = vld [vmem:[%s1157 + $0x68] sm:$0xff]
        %v1172 = vld [vmem:[%s1157 + $0x70] sm:$0xff]
        %v1173 = vld [vmem:[%s1157 + $0x78] sm:$0xff]
        %v1174 = vld [vmem:[%s1157 + $0x80] sm:$0xff]
        %v1175 = vld [vmem:[%s1157 + $0x88] sm:$0xff]
        %v1176 = vld [vmem:[%s1157 + $0x90] sm:$0xff]
        %v1177 = vld [vmem:[%s1157 + $0x98] sm:$0xff]
        %v1178 = vld [vmem:[%s1157 + $0xa0] sm:$0x11]
        %v1180 = vshrl.u32 %v1134, 16
        %v1182 = vshll.u32 %v1134, 16
        %v1184 = vrot.slane %v1182, 1
        %v1185 = vor.u32 %v1180, %v1184
        %v1187 = vshrl.u32 %v1135, 16
        %v1189 = vshll.u32 %v1135, 16
        %v1191 = vrot.slane %v1189, 1
        %v1192 = vor.u32 %v1187, %v1191
        %v1215 = vunpack.c.l.b16 %v1158
        %v1216 = vunpack.c.h.b16 %v1158
        %v1217 = vunpack.c.l.b16 %v1159
        %v1218 = vunpack.c.h.b16 %v1159
        %v1219 = vunpack.c.l.b16 %v1160
        %v1220 = vunpack.c.h.b16 %v1160
        %v1221 = vunpack.c.l.b16 %v1161
        %v1222 = vunpack.c.h.b16 %v1161
        %v1223 = vunpack.c.l.b16 %v1162
        %v1224 = vunpack.c.h.b16 %v1162
        %v1225 = vunpack.c.l.b16 %v1163
        %v1226 = vunpack.c.h.b16 %v1163
        %v1227 = vunpack.c.l.b16 %v1164
        %v1228 = vunpack.c.h.b16 %v1164
        %v1229 = vunpack.c.l.b16 %v1165
        %v1230 = vunpack.c.h.b16 %v1165
        %v1231 = vunpack.c.l.b16 %v1166
        %v1232 = vunpack.c.h.b16 %v1166
        %v1233 = vunpack.c.l.b16 %v1167
        %v1234 = vunpack.c.h.b16 %v1167
        %v1235 = vunpack.c.l.b16 %v1168
        %v1236 = vunpack.c.h.b16 %v1168
        %v1237 = vunpack.c.l.b16 %v1169
        %v1238 = vunpack.c.h.b16 %v1169
        %v1239 = vunpack.c.l.b16 %v1170
        %v1240 = vunpack.c.h.b16 %v1170
        %v1241 = vunpack.c.l.b16 %v1171
        %v1242 = vunpack.c.h.b16 %v1171
        %v1243 = vunpack.c.l.b16 %v1172
        %v1244 = vunpack.c.h.b16 %v1172
        %v1245 = vunpack.c.l.b16 %v1173
        %v1246 = vunpack.c.h.b16 %v1173
        %v1247 = vunpack.c.l.b16 %v1174
        %v1248 = vunpack.c.h.b16 %v1174
        %v1249 = vunpack.c.l.b16 %v1175
        %v1250 = vunpack.c.h.b16 %v1175
        %v1251 = vunpack.c.l.b16 %v1176
        %v1252 = vunpack.c.h.b16 %v1176
        %v1253 = vunpack.c.l.b16 %v1177
        %v1254 = vunpack.c.h.b16 %v1177
        %v1255 = vunpack.c.l.b16 %v1178
        %v1256 = vunpack.c.h.b16 %v1178
        %v1257 = vpack.c.b16 %v1217, %v1215
        %v1258 = vpack.c.b16 %v1218, %v1216
        %v1259 = vpack.c.b16 %v1221, %v1219
        %v1260 = vpack.c.b16 %v1222, %v1220
        %v1261 = vpack.c.b16 %v1225, %v1223
        %v1262 = vpack.c.b16 %v1226, %v1224
        %v1263 = vpack.c.b16 %v1229, %v1227
        %v1264 = vpack.c.b16 %v1230, %v1228
        %v1265 = vpack.c.b16 %v1233, %v1231
        %v1266 = vpack.c.b16 %v1234, %v1232
        %v1267 = vpack.c.b16 %v1237, %v1235
        %v1268 = vpack.c.b16 %v1238, %v1236
        %v1269 = vpack.c.b16 %v1241, %v1239
        %v1270 = vpack.c.b16 %v1242, %v1240
        %v1271 = vpack.c.b16 %v1245, %v1243
        %v1272 = vpack.c.b16 %v1246, %v1244
        %v1273 = vpack.c.b16 %v1249, %v1247
        %v1274 = vpack.c.b16 %v1250, %v1248
        %v1275 = vpack.c.b16 %v1253, %v1251
        %v1276 = vpack.c.b16 %v1254, %v1252
        %v1277 = vpack.c.b16 %v1255, %v1255
        %v1278 = vpack.c.b16 %v1256, %v1256
        %vm1299 = vcmask 277504
        %v1301 = vsel %vm1299, %v1192, 0
        %vm1303 = vcmask 1040384
        %v1305 = vsel %vm1303, %v1277, 0
        %v1308 = vsel %vm1303, %v1278, 0
        %1310 = vmatprep.subr.bf16.mxu0 %v1272
        %1311 = vmatpush1.bf16.msra.mxu0 %v1271
        %1312 = vmatprep.subr.bf16.mxu0 %v1270
        %1313 = vmatpush1.bf16.msra.mxu0 %v1269
        %1314 = vmatprep.subr.bf16.mxu0 %v1268
        %1315 = vmatpush1.bf16.msra.mxu0 %v1267
        %1316 = vmatprep.subr.bf16.mxu0 %v1266
        %1317 = vmatpush1.bf16.msra.mxu0 %v1265
        %1318 = vmatprep.subr.bf16.mxu0 %v1264
        %1319 = vmatpush1.bf16.msra.mxu0 %v1263
        %1320 = vmatprep.subr.bf16.mxu0 %v1262
        %1321 = vmatpush1.bf16.msra.mxu0 %v1261
        %1322 = vmatprep.subr.bf16.mxu0 %v1260
        %1323 = vmatpush1.bf16.msra.mxu0 %v1259
        %1324 = vmatprep.subr.bf16.mxu0 %v1258
        %1325 = vmatpush1.bf16.msra.mxu0 %v1257
        %1326 = vmatprep.subr.bf16.mxu0 0
        %1327 = vmatpush2.bf16.msra.mxu0 0
        %1328 = vmatprep.subr.bf16.mxu0 0
        %1329 = vmatpush2.bf16.msra.mxu0 0
        %1330 = vmatprep.subr.bf16.mxu0 0
        %1331 = vmatpush2.bf16.msra.mxu0 0
        %1332 = vmatprep.subr.bf16.mxu0 0
        %1333 = vmatpush2.bf16.msra.mxu0 0
        %1334 = vmatprep.subr.bf16.mxu0 0
        %1335 = vmatpush2.bf16.msra.mxu0 0
        %1336 = vmatprep.subr.bf16.mxu0 %v1308
        %1337 = vmatpush2.bf16.msra.mxu0 %v1305
        %1338 = vmatprep.subr.bf16.mxu0 %v1276
        %1339 = vmatpush2.bf16.msra.mxu0 %v1275
        %1340 = vmatprep.subr.bf16.mxu0 %v1274
        %1341 = vmatpush2.bf16.msra.mxu0 %v1273
        %1342 = vmatprep.mubr.bf16.mxu0 %v1301
        %1343 = vmatmul.mubr.bf16.gmra.mxu0 %v1185
        %v1344 = vpop.f32.mrf.mxu0
        %v1345 = vadd.f32 0.0, %v1344
        %v1346 = vpop.f32.mrf.mxu0
        %v1347 = vadd.f32 0.0, %v1346
        %v1348 = vpop.f32.mrf.mxu0
        %v1349 = vadd.f32 0.0, %v1348
        %v1350 = vpop.f32.mrf.mxu0
        %v1351 = vadd.f32 0.0, %v1350
        %1352 = vdwg.mxu0
        %v1374 = vunpack.c.l.b16 %v1136
        %v1375 = vunpack.c.h.b16 %v1136
        %v1376 = vunpack.c.l.b16 %v1137
        %v1377 = vunpack.c.h.b16 %v1137
        %v1378 = vunpack.c.l.b16 %v1138
        %v1379 = vunpack.c.h.b16 %v1138
        %v1380 = vunpack.c.l.b16 %v1139
        %v1381 = vunpack.c.h.b16 %v1139
        %v1382 = vunpack.c.l.b16 %v1140
        %v1383 = vunpack.c.h.b16 %v1140
        %v1384 = vunpack.c.l.b16 %v1141
        %v1385 = vunpack.c.h.b16 %v1141
        %v1386 = vunpack.c.l.b16 %v1142
        %v1387 = vunpack.c.h.b16 %v1142
        %v1388 = vunpack.c.l.b16 %v1143
        %v1389 = vunpack.c.h.b16 %v1143
        %v1390 = vunpack.c.l.b16 %v1144
        %v1391 = vunpack.c.h.b16 %v1144
        %v1392 = vunpack.c.l.b16 %v1145
        %v1393 = vunpack.c.h.b16 %v1145
        %v1394 = vunpack.c.l.b16 %v1146
        %v1395 = vunpack.c.h.b16 %v1146
        %v1396 = vunpack.c.l.b16 %v1147
        %v1397 = vunpack.c.h.b16 %v1147
        %v1398 = vunpack.c.l.b16 %v1148
        %v1399 = vunpack.c.h.b16 %v1148
        %v1400 = vunpack.c.l.b16 %v1149
        %v1401 = vunpack.c.h.b16 %v1149
        %v1402 = vunpack.c.l.b16 %v1150
        %v1403 = vunpack.c.h.b16 %v1150
        %v1404 = vunpack.c.l.b16 %v1151
        %v1405 = vunpack.c.h.b16 %v1151
        %v1406 = vunpack.c.l.b16 %v1152
        %v1407 = vunpack.c.h.b16 %v1152
        %v1408 = vunpack.c.l.b16 %v1153
        %v1409 = vunpack.c.h.b16 %v1153
        %v1410 = vunpack.c.l.b16 %v1154
        %v1411 = vunpack.c.h.b16 %v1154
        %v1412 = vunpack.c.l.b16 %v1155
        %v1413 = vunpack.c.h.b16 %v1155
        %v1414 = vunpack.c.l.b16 %v1156
        %v1415 = vunpack.c.h.b16 %v1156
        %v1416 = vpack.c.b16 %v1376, %v1374
        %v1417 = vpack.c.b16 %v1377, %v1375
        %v1418 = vpack.c.b16 %v1380, %v1378
        %v1419 = vpack.c.b16 %v1381, %v1379
        %v1420 = vpack.c.b16 %v1384, %v1382
        %v1421 = vpack.c.b16 %v1385, %v1383
        %v1422 = vpack.c.b16 %v1388, %v1386
        %v1423 = vpack.c.b16 %v1389, %v1387
        %v1424 = vpack.c.b16 %v1392, %v1390
        %v1425 = vpack.c.b16 %v1393, %v1391
        %v1426 = vpack.c.b16 %v1396, %v1394
        %v1427 = vpack.c.b16 %v1397, %v1395
        %v1428 = vpack.c.b16 %v1400, %v1398
        %v1429 = vpack.c.b16 %v1401, %v1399
        %v1430 = vpack.c.b16 %v1404, %v1402
        %v1431 = vpack.c.b16 %v1405, %v1403
        %v1432 = vpack.c.b16 %v1408, %v1406
        %v1433 = vpack.c.b16 %v1409, %v1407
        %v1434 = vpack.c.b16 %v1412, %v1410
        %v1435 = vpack.c.b16 %v1413, %v1411
        %v1436 = vpack.c.b16 %v1414, %v1414
        %v1437 = vpack.c.b16 %v1415, %v1415
        %v1458 = vsel %vm1299, %v1135, 0
        %v1461 = vsel %vm1303, %v1436, 0
        %v1464 = vsel %vm1303, %v1437, 0
        %1466 = vmatprep.subr.bf16.mxu0 %v1431
        %1467 = vmatpush1.bf16.msra.mxu0 %v1430
        %1468 = vmatprep.subr.bf16.mxu0 %v1429
        %1469 = vmatpush1.bf16.msra.mxu0 %v1428
        %1470 = vmatprep.subr.bf16.mxu0 %v1427
        %1471 = vmatpush1.bf16.msra.mxu0 %v1426
        %1472 = vmatprep.subr.bf16.mxu0 %v1425
        %1473 = vmatpush1.bf16.msra.mxu0 %v1424
        %1474 = vmatprep.subr.bf16.mxu0 %v1423
        %1475 = vmatpush1.bf16.msra.mxu0 %v1422
        %1476 = vmatprep.subr.bf16.mxu0 %v1421
        %1477 = vmatpush1.bf16.msra.mxu0 %v1420
        %1478 = vmatprep.subr.bf16.mxu0 %v1419
        %1479 = vmatpush1.bf16.msra.mxu0 %v1418
        %1480 = vmatprep.subr.bf16.mxu0 %v1417
        %1481 = vmatpush1.bf16.msra.mxu0 %v1416
        %1482 = vmatprep.subr.bf16.mxu0 0
        %1483 = vmatpush2.bf16.msra.mxu0 0
        %1484 = vmatprep.subr.bf16.mxu0 0
        %1485 = vmatpush2.bf16.msra.mxu0 0
        %1486 = vmatprep.subr.bf16.mxu0 0
        %1487 = vmatpush2.bf16.msra.mxu0 0
        %1488 = vmatprep.subr.bf16.mxu0 0
        %1489 = vmatpush2.bf16.msra.mxu0 0
        %1490 = vmatprep.subr.bf16.mxu0 0
        %1491 = vmatpush2.bf16.msra.mxu0 0
        %1492 = vmatprep.subr.bf16.mxu0 %v1464
        %1493 = vmatpush2.bf16.msra.mxu0 %v1461
        %1494 = vmatprep.subr.bf16.mxu0 %v1435
        %1495 = vmatpush2.bf16.msra.mxu0 %v1434
        %1496 = vmatprep.subr.bf16.mxu0 %v1433
        %1497 = vmatpush2.bf16.msra.mxu0 %v1432
        %1498 = vmatprep.mubr.bf16.mxu0 %v1458
        %1499 = vmatmul.mubr.bf16.gmra.mxu0 %v1134
        %v1500 = vpop.f32.mrf.mxu0
        %v1501 = vadd.f32 %v1345, %v1500
        %v1502 = vpop.f32.mrf.mxu0
        %v1503 = vadd.f32 %v1347, %v1502
        %v1504 = vpop.f32.mrf.mxu0
        %v1505 = vadd.f32 %v1349, %v1504
        %v1506 = vpop.f32.mrf.mxu0
        %v1507 = vadd.f32 %v1351, %v1506
        %1508 = vdwg.mxu0
        %s1509 = scalar_lea.vmem %s4, 336
        %v1510 = vld [vmem:[%s1509] sm:$0xff]
        %v1511 = vld [vmem:[%s1509 + $0x8] sm:$0xff]
        %v1512 = vld [vmem:[%s1509 + $0x10] sm:$0xff]
        %v1513 = vld [vmem:[%s1509 + $0x18] sm:$0xff]
        %v1514 = vld [vmem:[%s1509 + $0x20] sm:$0xff]
        %v1515 = vld [vmem:[%s1509 + $0x28] sm:$0xff]
        %v1516 = vld [vmem:[%s1509 + $0x30] sm:$0xff]
        %v1517 = vld [vmem:[%s1509 + $0x38] sm:$0xff]
        %v1518 = vld [vmem:[%s1509 + $0x40] sm:$0xff]
        %v1519 = vld [vmem:[%s1509 + $0x48] sm:$0xff]
        %v1520 = vld [vmem:[%s1509 + $0x50] sm:$0xff]
        %v1521 = vld [vmem:[%s1509 + $0x58] sm:$0xff]
        %v1522 = vld [vmem:[%s1509 + $0x60] sm:$0xff]
        %v1523 = vld [vmem:[%s1509 + $0x68] sm:$0xff]
        %v1524 = vld [vmem:[%s1509 + $0x70] sm:$0xff]
        %v1525 = vld [vmem:[%s1509 + $0x78] sm:$0xff]
        %v1526 = vld [vmem:[%s1509 + $0x80] sm:$0xff]
        %v1527 = vld [vmem:[%s1509 + $0x88] sm:$0xff]
        %v1528 = vld [vmem:[%s1509 + $0x90] sm:$0xff]
        %v1529 = vld [vmem:[%s1509 + $0x98] sm:$0xff]
        %v1530 = vld [vmem:[%s1509 + $0xa0] sm:$0x11]
        %v1533 = vrot.slane %v1134, 1
        %v1534 = vrot.slane %v1135, 1
        %v1557 = vunpack.c.l.b16 %v1510
        %v1558 = vunpack.c.h.b16 %v1510
        %v1559 = vunpack.c.l.b16 %v1511
        %v1560 = vunpack.c.h.b16 %v1511
        %v1561 = vunpack.c.l.b16 %v1512
        %v1562 = vunpack.c.h.b16 %v1512
        %v1563 = vunpack.c.l.b16 %v1513
        %v1564 = vunpack.c.h.b16 %v1513
        %v1565 = vunpack.c.l.b16 %v1514
        %v1566 = vunpack.c.h.b16 %v1514
        %v1567 = vunpack.c.l.b16 %v1515
        %v1568 = vunpack.c.h.b16 %v1515
        %v1569 = vunpack.c.l.b16 %v1516
        %v1570 = vunpack.c.h.b16 %v1516
        %v1571 = vunpack.c.l.b16 %v1517
        %v1572 = vunpack.c.h.b16 %v1517
        %v1573 = vunpack.c.l.b16 %v1518
        %v1574 = vunpack.c.h.b16 %v1518
        %v1575 = vunpack.c.l.b16 %v1519
        %v1576 = vunpack.c.h.b16 %v1519
        %v1577 = vunpack.c.l.b16 %v1520
        %v1578 = vunpack.c.h.b16 %v1520
        %v1579 = vunpack.c.l.b16 %v1521
        %v1580 = vunpack.c.h.b16 %v1521
        %v1581 = vunpack.c.l.b16 %v1522
        %v1582 = vunpack.c.h.b16 %v1522
        %v1583 = vunpack.c.l.b16 %v1523
        %v1584 = vunpack.c.h.b16 %v1523
        %v1585 = vunpack.c.l.b16 %v1524
        %v1586 = vunpack.c.h.b16 %v1524
        %v1587 = vunpack.c.l.b16 %v1525
        %v1588 = vunpack.c.h.b16 %v1525
        %v1589 = vunpack.c.l.b16 %v1526
        %v1590 = vunpack.c.h.b16 %v1526
        %v1591 = vunpack.c.l.b16 %v1527
        %v1592 = vunpack.c.h.b16 %v1527
        %v1593 = vunpack.c.l.b16 %v1528
        %v1594 = vunpack.c.h.b16 %v1528
        %v1595 = vunpack.c.l.b16 %v1529
        %v1596 = vunpack.c.h.b16 %v1529
        %v1597 = vunpack.c.l.b16 %v1530
        %v1598 = vunpack.c.h.b16 %v1530
        %v1599 = vpack.c.b16 %v1559, %v1557
        %v1600 = vpack.c.b16 %v1560, %v1558
        %v1601 = vpack.c.b16 %v1563, %v1561
        %v1602 = vpack.c.b16 %v1564, %v1562
        %v1603 = vpack.c.b16 %v1567, %v1565
        %v1604 = vpack.c.b16 %v1568, %v1566
        %v1605 = vpack.c.b16 %v1571, %v1569
        %v1606 = vpack.c.b16 %v1572, %v1570
        %v1607 = vpack.c.b16 %v1575, %v1573
        %v1608 = vpack.c.b16 %v1576, %v1574
        %v1609 = vpack.c.b16 %v1579, %v1577
        %v1610 = vpack.c.b16 %v1580, %v1578
        %v1611 = vpack.c.b16 %v1583, %v1581
        %v1612 = vpack.c.b16 %v1584, %v1582
        %v1613 = vpack.c.b16 %v1587, %v1585
        %v1614 = vpack.c.b16 %v1588, %v1586
        %v1615 = vpack.c.b16 %v1591, %v1589
        %v1616 = vpack.c.b16 %v1592, %v1590
        %v1617 = vpack.c.b16 %v1595, %v1593
        %v1618 = vpack.c.b16 %v1596, %v1594
        %v1619 = vpack.c.b16 %v1597, %v1597
        %v1620 = vpack.c.b16 %v1598, %v1598
        %v1642 = vsel %vm1299, %v1534, 0
        %v1645 = vsel %vm1303, %v1619, 0
        %v1648 = vsel %vm1303, %v1620, 0
        %1650 = vmatprep.subr.bf16.mxu0 %v1614
        %1651 = vmatpush1.bf16.msra.mxu0 %v1613
        %1652 = vmatprep.subr.bf16.mxu0 %v1612
        %1653 = vmatpush1.bf16.msra.mxu0 %v1611
        %1654 = vmatprep.subr.bf16.mxu0 %v1610
        %1655 = vmatpush1.bf16.msra.mxu0 %v1609
        %1656 = vmatprep.subr.bf16.mxu0 %v1608
        %1657 = vmatpush1.bf16.msra.mxu0 %v1607
        %1658 = vmatprep.subr.bf16.mxu0 %v1606
        %1659 = vmatpush1.bf16.msra.mxu0 %v1605
        %1660 = vmatprep.subr.bf16.mxu0 %v1604
        %1661 = vmatpush1.bf16.msra.mxu0 %v1603
        %1662 = vmatprep.subr.bf16.mxu0 %v1602
        %1663 = vmatpush1.bf16.msra.mxu0 %v1601
        %1664 = vmatprep.subr.bf16.mxu0 %v1600
        %1665 = vmatpush1.bf16.msra.mxu0 %v1599
        %1666 = vmatprep.subr.bf16.mxu0 0
        %1667 = vmatpush2.bf16.msra.mxu0 0
        %1668 = vmatprep.subr.bf16.mxu0 0
        %1669 = vmatpush2.bf16.msra.mxu0 0
        %1670 = vmatprep.subr.bf16.mxu0 0
        %1671 = vmatpush2.bf16.msra.mxu0 0
        %1672 = vmatprep.subr.bf16.mxu0 0
        %1673 = vmatpush2.bf16.msra.mxu0 0
        %1674 = vmatprep.subr.bf16.mxu0 0
        %1675 = vmatpush2.bf16.msra.mxu0 0
        %1676 = vmatprep.subr.bf16.mxu0 %v1648
        %1677 = vmatpush2.bf16.msra.mxu0 %v1645
        %1678 = vmatprep.subr.bf16.mxu0 %v1618
        %1679 = vmatpush2.bf16.msra.mxu0 %v1617
        %1680 = vmatprep.subr.bf16.mxu0 %v1616
        %1681 = vmatpush2.bf16.msra.mxu0 %v1615
        %1682 = vmatprep.mubr.bf16.mxu0 %v1642
        %1683 = vmatmul.mubr.bf16.gmra.mxu0 %v1533
        %v1684 = vpop.f32.mrf.mxu0
        %v1685 = vadd.f32 0.0, %v1684
        %v1686 = vpop.f32.mrf.mxu0
        %v1687 = vadd.f32 0.0, %v1686
        %v1688 = vpop.f32.mrf.mxu0
        %v1689 = vadd.f32 0.0, %v1688
        %v1690 = vpop.f32.mrf.mxu0
        %v1691 = vadd.f32 0.0, %v1690
        %1692 = vdwg.mxu0
        %v1693 = vadd.f32 %v1501, %v1685
        %v1694 = vadd.f32 %v1503, %v1687
        %v1695 = vadd.f32 %v1505, %v1689
        %v1696 = vadd.f32 %v1507, %v1691
        %s1697 = scalar_lea.vmem %s4, 504
        %v1698 = vld [vmem:[%s1697] sm:$0xff]
        %v1699 = vld [vmem:[%s1697 + $0x8] sm:$0xff]
        %v1700 = vld [vmem:[%s1697 + $0x10] sm:$0xff]
        %v1701 = vld [vmem:[%s1697 + $0x18] sm:$0xff]
        %v1702 = vld [vmem:[%s1697 + $0x20] sm:$0xff]
        %v1703 = vld [vmem:[%s1697 + $0x28] sm:$0xff]
        %v1704 = vld [vmem:[%s1697 + $0x30] sm:$0xff]
        %v1705 = vld [vmem:[%s1697 + $0x38] sm:$0xff]
        %v1706 = vld [vmem:[%s1697 + $0x40] sm:$0xff]
        %v1707 = vld [vmem:[%s1697 + $0x48] sm:$0xff]
        %v1708 = vld [vmem:[%s1697 + $0x50] sm:$0xff]
        %v1709 = vld [vmem:[%s1697 + $0x58] sm:$0xff]
        %v1710 = vld [vmem:[%s1697 + $0x60] sm:$0xff]
        %v1711 = vld [vmem:[%s1697 + $0x68] sm:$0xff]
        %v1712 = vld [vmem:[%s1697 + $0x70] sm:$0xff]
        %v1713 = vld [vmem:[%s1697 + $0x78] sm:$0xff]
        %v1714 = vld [vmem:[%s1697 + $0x80] sm:$0xff]
        %v1715 = vld [vmem:[%s1697 + $0x88] sm:$0xff]
        %v1716 = vld [vmem:[%s1697 + $0x90] sm:$0xff]
        %v1717 = vld [vmem:[%s1697 + $0x98] sm:$0xff]
        %v1718 = vld [vmem:[%s1697 + $0xa0] sm:$0x11]
        %v1719 = vrot.slane %v1180, 1
        %v1720 = vrot.slane %v1182, 2
        %v1721 = vor.u32 %v1719, %v1720
        %v1722 = vrot.slane %v1187, 1
        %v1723 = vrot.slane %v1189, 2
        %v1724 = vor.u32 %v1722, %v1723
        %v1747 = vunpack.c.l.b16 %v1698
        %v1748 = vunpack.c.h.b16 %v1698
        %v1749 = vunpack.c.l.b16 %v1699
        %v1750 = vunpack.c.h.b16 %v1699
        %v1751 = vunpack.c.l.b16 %v1700
        %v1752 = vunpack.c.h.b16 %v1700
        %v1753 = vunpack.c.l.b16 %v1701
        %v1754 = vunpack.c.h.b16 %v1701
        %v1755 = vunpack.c.l.b16 %v1702
        %v1756 = vunpack.c.h.b16 %v1702
        %v1757 = vunpack.c.l.b16 %v1703
        %v1758 = vunpack.c.h.b16 %v1703
        %v1759 = vunpack.c.l.b16 %v1704
        %v1760 = vunpack.c.h.b16 %v1704
        %v1761 = vunpack.c.l.b16 %v1705
        %v1762 = vunpack.c.h.b16 %v1705
        %v1763 = vunpack.c.l.b16 %v1706
        %v1764 = vunpack.c.h.b16 %v1706
        %v1765 = vunpack.c.l.b16 %v1707
        %v1766 = vunpack.c.h.b16 %v1707
        %v1767 = vunpack.c.l.b16 %v1708
        %v1768 = vunpack.c.h.b16 %v1708
        %v1769 = vunpack.c.l.b16 %v1709
        %v1770 = vunpack.c.h.b16 %v1709
        %v1771 = vunpack.c.l.b16 %v1710
        %v1772 = vunpack.c.h.b16 %v1710
        %v1773 = vunpack.c.l.b16 %v1711
        %v1774 = vunpack.c.h.b16 %v1711
        %v1775 = vunpack.c.l.b16 %v1712
        %v1776 = vunpack.c.h.b16 %v1712
        %v1777 = vunpack.c.l.b16 %v1713
        %v1778 = vunpack.c.h.b16 %v1713
        %v1779 = vunpack.c.l.b16 %v1714
        %v1780 = vunpack.c.h.b16 %v1714
        %v1781 = vunpack.c.l.b16 %v1715
        %v1782 = vunpack.c.h.b16 %v1715
        %v1783 = vunpack.c.l.b16 %v1716
        %v1784 = vunpack.c.h.b16 %v1716
        %v1785 = vunpack.c.l.b16 %v1717
        %v1786 = vunpack.c.h.b16 %v1717
        %v1787 = vunpack.c.l.b16 %v1718
        %v1788 = vunpack.c.h.b16 %v1718
        %v1789 = vpack.c.b16 %v1749, %v1747
        %v1790 = vpack.c.b16 %v1750, %v1748
        %v1791 = vpack.c.b16 %v1753, %v1751
        %v1792 = vpack.c.b16 %v1754, %v1752
        %v1793 = vpack.c.b16 %v1757, %v1755
        %v1794 = vpack.c.b16 %v1758, %v1756
        %v1795 = vpack.c.b16 %v1761, %v1759
        %v1796 = vpack.c.b16 %v1762, %v1760
        %v1797 = vpack.c.b16 %v1765, %v1763
        %v1798 = vpack.c.b16 %v1766, %v1764
        %v1799 = vpack.c.b16 %v1769, %v1767
        %v1800 = vpack.c.b16 %v1770, %v1768
        %v1801 = vpack.c.b16 %v1773, %v1771
        %v1802 = vpack.c.b16 %v1774, %v1772
        %v1803 = vpack.c.b16 %v1777, %v1775
        %v1804 = vpack.c.b16 %v1778, %v1776
        %v1805 = vpack.c.b16 %v1781, %v1779
        %v1806 = vpack.c.b16 %v1782, %v1780
        %v1807 = vpack.c.b16 %v1785, %v1783
        %v1808 = vpack.c.b16 %v1786, %v1784
        %v1809 = vpack.c.b16 %v1787, %v1787
        %v1810 = vpack.c.b16 %v1788, %v1788
        %v1832 = vsel %vm1299, %v1724, 0
        %v1835 = vsel %vm1303, %v1809, 0
        %v1838 = vsel %vm1303, %v1810, 0
        %1840 = vmatprep.subr.bf16.mxu0 %v1804
        %1841 = vmatpush1.bf16.msra.mxu0 %v1803
        %1842 = vmatprep.subr.bf16.mxu0 %v1802
        %1843 = vmatpush1.bf16.msra.mxu0 %v1801
        %1844 = vmatprep.subr.bf16.mxu0 %v1800
        %1845 = vmatpush1.bf16.msra.mxu0 %v1799
        %1846 = vmatprep.subr.bf16.mxu0 %v1798
        %1847 = vmatpush1.bf16.msra.mxu0 %v1797
        %1848 = vmatprep.subr.bf16.mxu0 %v1796
        %1849 = vmatpush1.bf16.msra.mxu0 %v1795
        %1850 = vmatprep.subr.bf16.mxu0 %v1794
        %1851 = vmatpush1.bf16.msra.mxu0 %v1793
        %1852 = vmatprep.subr.bf16.mxu0 %v1792
        %1853 = vmatpush1.bf16.msra.mxu0 %v1791
        %1854 = vmatprep.subr.bf16.mxu0 %v1790
        %1855 = vmatpush1.bf16.msra.mxu0 %v1789
        %1856 = vmatprep.subr.bf16.mxu0 0
        %1857 = vmatpush2.bf16.msra.mxu0 0
        %1858 = vmatprep.subr.bf16.mxu0 0
        %1859 = vmatpush2.bf16.msra.mxu0 0
        %1860 = vmatprep.subr.bf16.mxu0 0
        %1861 = vmatpush2.bf16.msra.mxu0 0
        %1862 = vmatprep.subr.bf16.mxu0 0
        %1863 = vmatpush2.bf16.msra.mxu0 0
        %1864 = vmatprep.subr.bf16.mxu0 0
        %1865 = vmatpush2.bf16.msra.mxu0 0
        %1866 = vmatprep.subr.bf16.mxu0 %v1838
        %1867 = vmatpush2.bf16.msra.mxu0 %v1835
        %1868 = vmatprep.subr.bf16.mxu0 %v1808
        %1869 = vmatpush2.bf16.msra.mxu0 %v1807
        %1870 = vmatprep.subr.bf16.mxu0 %v1806
        %1871 = vmatpush2.bf16.msra.mxu0 %v1805
        %1872 = vmatprep.mubr.bf16.mxu0 %v1832
        %1873 = vmatmul.mubr.bf16.gmra.mxu0 %v1721
        %v1874 = vpop.f32.mrf.mxu0
        %v1875 = vadd.f32 0.0, %v1874
        %v1876 = vpop.f32.mrf.mxu0
        %v1877 = vadd.f32 0.0, %v1876
        %v1878 = vpop.f32.mrf.mxu0
        %v1879 = vadd.f32 0.0, %v1878
        %v1880 = vpop.f32.mrf.mxu0
        %v1881 = vadd.f32 0.0, %v1880
        %1882 = vdwg.mxu0
        %v1883 = vadd.f32 %v1693, %v1875
        %v1884 = vadd.f32 %v1694, %v1877
        %v1885 = vadd.f32 %v1695, %v1879
        %v1886 = vadd.f32 %v1696, %v1881
        %s1887 = scalar_lea.vmem %s4, 672
        %v1888 = vld [vmem:[%s1887] sm:$0xff]
        %v1889 = vld [vmem:[%s1887 + $0x8] sm:$0xff]
        %v1890 = vld [vmem:[%s1887 + $0x10] sm:$0xff]
        %v1891 = vld [vmem:[%s1887 + $0x18] sm:$0xff]
        %v1892 = vld [vmem:[%s1887 + $0x20] sm:$0xff]
        %v1893 = vld [vmem:[%s1887 + $0x28] sm:$0xff]
        %v1894 = vld [vmem:[%s1887 + $0x30] sm:$0xff]
        %v1895 = vld [vmem:[%s1887 + $0x38] sm:$0xff]
        %v1896 = vld [vmem:[%s1887 + $0x40] sm:$0xff]
        %v1897 = vld [vmem:[%s1887 + $0x48] sm:$0xff]
        %v1898 = vld [vmem:[%s1887 + $0x50] sm:$0xff]
        %v1899 = vld [vmem:[%s1887 + $0x58] sm:$0xff]
        %v1900 = vld [vmem:[%s1887 + $0x60] sm:$0xff]
        %v1901 = vld [vmem:[%s1887 + $0x68] sm:$0xff]
        %v1902 = vld [vmem:[%s1887 + $0x70] sm:$0xff]
        %v1903 = vld [vmem:[%s1887 + $0x78] sm:$0xff]
        %v1904 = vld [vmem:[%s1887 + $0x80] sm:$0xff]
        %v1905 = vld [vmem:[%s1887 + $0x88] sm:$0xff]
        %v1906 = vld [vmem:[%s1887 + $0x90] sm:$0xff]
        %v1907 = vld [vmem:[%s1887 + $0x98] sm:$0xff]
        %v1908 = vld [vmem:[%s1887 + $0xa0] sm:$0x11]
        %v1909 = vrot.slane %v1134, 2
        %v1910 = vrot.slane %v1135, 2
        %v1933 = vunpack.c.l.b16 %v1888
        %v1934 = vunpack.c.h.b16 %v1888
        %v1935 = vunpack.c.l.b16 %v1889
        %v1936 = vunpack.c.h.b16 %v1889
        %v1937 = vunpack.c.l.b16 %v1890
        %v1938 = vunpack.c.h.b16 %v1890
        %v1939 = vunpack.c.l.b16 %v1891
        %v1940 = vunpack.c.h.b16 %v1891
        %v1941 = vunpack.c.l.b16 %v1892
        %v1942 = vunpack.c.h.b16 %v1892
        %v1943 = vunpack.c.l.b16 %v1893
        %v1944 = vunpack.c.h.b16 %v1893
        %v1945 = vunpack.c.l.b16 %v1894
        %v1946 = vunpack.c.h.b16 %v1894
        %v1947 = vunpack.c.l.b16 %v1895
        %v1948 = vunpack.c.h.b16 %v1895
        %v1949 = vunpack.c.l.b16 %v1896
        %v1950 = vunpack.c.h.b16 %v1896
        %v1951 = vunpack.c.l.b16 %v1897
        %v1952 = vunpack.c.h.b16 %v1897
        %v1953 = vunpack.c.l.b16 %v1898
        %v1954 = vunpack.c.h.b16 %v1898
        %v1955 = vunpack.c.l.b16 %v1899
        %v1956 = vunpack.c.h.b16 %v1899
        %v1957 = vunpack.c.l.b16 %v1900
        %v1958 = vunpack.c.h.b16 %v1900
        %v1959 = vunpack.c.l.b16 %v1901
        %v1960 = vunpack.c.h.b16 %v1901
        %v1961 = vunpack.c.l.b16 %v1902
        %v1962 = vunpack.c.h.b16 %v1902
        %v1963 = vunpack.c.l.b16 %v1903
        %v1964 = vunpack.c.h.b16 %v1903
        %v1965 = vunpack.c.l.b16 %v1904
        %v1966 = vunpack.c.h.b16 %v1904
        %v1967 = vunpack.c.l.b16 %v1905
        %v1968 = vunpack.c.h.b16 %v1905
        %v1969 = vunpack.c.l.b16 %v1906
        %v1970 = vunpack.c.h.b16 %v1906
        %v1971 = vunpack.c.l.b16 %v1907
        %v1972 = vunpack.c.h.b16 %v1907
        %v1973 = vunpack.c.l.b16 %v1908
        %v1974 = vunpack.c.h.b16 %v1908
        %v1975 = vpack.c.b16 %v1935, %v1933
        %v1976 = vpack.c.b16 %v1936, %v1934
        %v1977 = vpack.c.b16 %v1939, %v1937
        %v1978 = vpack.c.b16 %v1940, %v1938
        %v1979 = vpack.c.b16 %v1943, %v1941
        %v1980 = vpack.c.b16 %v1944, %v1942
        %v1981 = vpack.c.b16 %v1947, %v1945
        %v1982 = vpack.c.b16 %v1948, %v1946
        %v1983 = vpack.c.b16 %v1951, %v1949
        %v1984 = vpack.c.b16 %v1952, %v1950
        %v1985 = vpack.c.b16 %v1955, %v1953
        %v1986 = vpack.c.b16 %v1956, %v1954
        %v1987 = vpack.c.b16 %v1959, %v1957
        %v1988 = vpack.c.b16 %v1960, %v1958
        %v1989 = vpack.c.b16 %v1963, %v1961
        %v1990 = vpack.c.b16 %v1964, %v1962
        %v1991 = vpack.c.b16 %v1967, %v1965
        %v1992 = vpack.c.b16 %v1968, %v1966
        %v1993 = vpack.c.b16 %v1971, %v1969
        %v1994 = vpack.c.b16 %v1972, %v1970
        %v1995 = vpack.c.b16 %v1973, %v1973
        %v1996 = vpack.c.b16 %v1974, %v1974
        %v2018 = vsel %vm1299, %v1910, 0
        %v2021 = vsel %vm1303, %v1995, 0
        %v2024 = vsel %vm1303, %v1996, 0
        %2026 = vmatprep.subr.bf16.mxu0 %v1990
        %2027 = vmatpush1.bf16.msra.mxu0 %v1989
        %2028 = vmatprep.subr.bf16.mxu0 %v1988
        %2029 = vmatpush1.bf16.msra.mxu0 %v1987
        %2030 = vmatprep.subr.bf16.mxu0 %v1986
        %2031 = vmatpush1.bf16.msra.mxu0 %v1985
        %2032 = vmatprep.subr.bf16.mxu0 %v1984
        %2033 = vmatpush1.bf16.msra.mxu0 %v1983
        %2034 = vmatprep.subr.bf16.mxu0 %v1982
        %2035 = vmatpush1.bf16.msra.mxu0 %v1981
        %2036 = vmatprep.subr.bf16.mxu0 %v1980
        %2037 = vmatpush1.bf16.msra.mxu0 %v1979
        %2038 = vmatprep.subr.bf16.mxu0 %v1978
        %2039 = vmatpush1.bf16.msra.mxu0 %v1977
        %2040 = vmatprep.subr.bf16.mxu0 %v1976
        %2041 = vmatpush1.bf16.msra.mxu0 %v1975
        %2042 = vmatprep.subr.bf16.mxu0 0
        %2043 = vmatpush2.bf16.msra.mxu0 0
        %2044 = vmatprep.subr.bf16.mxu0 0
        %2045 = vmatpush2.bf16.msra.mxu0 0
        %2046 = vmatprep.subr.bf16.mxu0 0
        %2047 = vmatpush2.bf16.msra.mxu0 0
        %2048 = vmatprep.subr.bf16.mxu0 0
        %2049 = vmatpush2.bf16.msra.mxu0 0
        %2050 = vmatprep.subr.bf16.mxu0 0
        %2051 = vmatpush2.bf16.msra.mxu0 0
        %2052 = vmatprep.subr.bf16.mxu0 %v2024
        %2053 = vmatpush2.bf16.msra.mxu0 %v2021
        %2054 = vmatprep.subr.bf16.mxu0 %v1994
        %2055 = vmatpush2.bf16.msra.mxu0 %v1993
        %2056 = vmatprep.subr.bf16.mxu0 %v1992
        %2057 = vmatpush2.bf16.msra.mxu0 %v1991
        %2058 = vmatprep.mubr.bf16.mxu0 %v2018
        %2059 = vmatmul.mubr.bf16.gmra.mxu0 %v1909
        %v2060 = vpop.f32.mrf.mxu0
        %v2061 = vadd.f32 0.0, %v2060
        %v2062 = vpop.f32.mrf.mxu0
        %v2063 = vadd.f32 0.0, %v2062
        %v2064 = vpop.f32.mrf.mxu0
        %v2065 = vadd.f32 0.0, %v2064
        %v2066 = vpop.f32.mrf.mxu0
        %v2067 = vadd.f32 0.0, %v2066
        %2068 = vdwg.mxu0
        %v2069 = vadd.f32 %v1883, %v2061
        %v2070 = vadd.f32 %v1884, %v2063
        %v2071 = vadd.f32 %v1885, %v2065
        %v2072 = vadd.f32 %v1886, %v2067
        %v2073 = vld [vmem:[%s5] sm:$0x3]
        %v2075 = vlaneseq
        %v2076 = vshrl.u32 %v2075, 7
        %v2077 = vsub.s32 0, %v2076
        %v2078 = vrot.slane %v2073, %v2077
        %v2079 = vlaneseq
        %v2080 = vshrl.u32 %v2079, 7
        %v2081 = vsub.s32 1, %v2080
        %v2082 = vrot.slane %v2073, %v2081
        %v2085 = vadd.f32 %v2069, %v2078
        %v2086 = vadd.f32 %v2070, %v2082
        %v2087 = vadd.f32 %v2071, %v2078
        %v2088 = vadd.f32 %v2072, %v2082
        %v2089 = vmax.f32 %v2085, 0.0
        %v2090 = vmax.f32 %v2086, 0.0
        %v2091 = vmax.f32 %v2087, 0.0
        %v2092 = vmax.f32 %v2088, 0.0
        %v2097 = vrot.slane %v2089, 1
        %v2098 = vrot.slane %v2091, 1
        %v2099 = vsel %vm991, %v2097, %v2098
        %v2100 = vrot.slane %v2090, 1
        %v2101 = vrot.slane %v2092, 1
        %v2102 = vsel %vm991, %v2100, %v2101
        %v2107 = vmax.f32 %v2089, %v2099
        %v2108 = vmax.f32 %v2090, %v2102
        %v2109 = vmax.f32 %v2091, %v2098
        %v2110 = vmax.f32 %v2092, %v2101
        %2115 = vrot.lane.b32.xlu0 %v2107, 112
        %v2116 = vpop.permute.xlu0 %2115
        %2117 = vrot.lane.b32.xlu0 %v2108, 112
        %v2118 = vpop.permute.xlu0 %2117
        %2119 = vrot.lane.b32.xlu0 %v2109, 112
        %v2120 = vpop.permute.xlu0 %2119
        %2121 = vrot.lane.b32.xlu0 %v2110, 112
        %v2122 = vpop.permute.xlu0 %2121
        %vm2123 = vcmask 916480
        %v2124 = vsel %vm2123, %v2116, %v2118
        %v2125 = vsel %vm2123, %v2120, %v2122
        %v2130 = vmax.f32 %v2107, %v2124
        %v2131 = vmax.f32 %v2108, %v2118
        %v2132 = vmax.f32 %v2109, %v2125
        %v2133 = vmax.f32 %v2110, %v2122
        %v2134 = vld [vmem:[%s6] sm:$0x7]
        %v2135 = vpack.c.bf16 %v2132, %v2130
        %v2136 = vpack.c.bf16 %v2133, %v2131
        %vm2137 = vcmask 72704
        %v2139 = vsel %vm2137, %v2134, 0
        %vm2141 = vcmask 1043456
        %vm2142 = vcmask 1044480
        %v2143 = vsel %vm2141, 4294967295, 65535
        %v2144 = vsel %vm2142, %v2143, 0
        %v2146 = vand.u32 %v2135, %v2144
        %v2149 = vand.u32 %v2136, %v2144
        %2151 = vmatprep.subr.bf16.mxu0 0
        %2152 = vmatpush1.bf16.msra.mxu0 0
        %2153 = vmatprep.subr.bf16.mxu0 0
        %2154 = vmatpush1.bf16.msra.mxu0 0
        %2155 = vmatprep.subr.bf16.mxu0 0
        %2156 = vmatpush1.bf16.msra.mxu0 0
        %2157 = vmatprep.subr.bf16.mxu0 0
        %2158 = vmatpush1.bf16.msra.mxu0 0
        %2159 = vmatprep.subr.bf16.mxu0 0
        %2160 = vmatpush1.bf16.msra.mxu0 0
        %2161 = vmatprep.subr.bf16.mxu0 0
        %2162 = vmatpush1.bf16.msra.mxu0 0
        %2163 = vmatprep.subr.bf16.mxu0 0
        %2164 = vmatpush1.bf16.msra.mxu0 0
        %2165 = vmatprep.subr.bf16.mxu0 %v2149
        %2166 = vmatpush1.bf16.msra.mxu0 %v2146
        %2167 = vmatprep.subr.bf16.mxu0 0
        %2168 = vmatpush2.bf16.msra.mxu0 0
        %2169 = vmatprep.subr.bf16.mxu0 0
        %2170 = vmatpush2.bf16.msra.mxu0 0
        %2171 = vmatprep.subr.bf16.mxu0 0
        %2172 = vmatpush2.bf16.msra.mxu0 0
        %2173 = vmatprep.subr.bf16.mxu0 0
        %2174 = vmatpush2.bf16.msra.mxu0 0
        %2175 = vmatprep.subr.bf16.mxu0 0
        %2176 = vmatpush2.bf16.msra.mxu0 0
        %2177 = vmatprep.subr.bf16.mxu0 0
        %2178 = vmatpush2.bf16.msra.mxu0 0
        %2179 = vmatprep.subr.bf16.mxu0 0
        %2180 = vmatpush2.bf16.msra.mxu0 0
        %2181 = vmatprep.subr.bf16.mxu0 0
        %2182 = vmatpush2.bf16.msra.mxu0 0
        %2183 = vmatprep.mubr.bf16.mxu0 0
        %2184 = vmatmul.mubr.bf16.gmra.mxu0 %v2139
        %v2185 = vpop.f32.mrf.mxu0
        %v2186 = vadd.f32 0.0, %v2185
        %v2187 = vpop.f32.mrf.mxu0
        %v2188 = vadd.f32 0.0, %v2187
        %v2189 = vpop.f32.mrf.mxu0
        %v2190 = vpop.f32.mrf.mxu0
        %2191 = vdwg.mxu0
        %v2192 = vpack.c.bf16 %v2186, %v2186
        %v2193 = vpack.c.bf16 %v2188, %v2188
        %v2194 = vld [vmem:[%s7] sm:$0xf]
        %v2195 = vld [vmem:[%s7 + $0x4] sm:$0xf]
        %v2196 = vld [vmem:[%s7 + $0x8] sm:$0xf]
        %v2197 = vld [vmem:[%s7 + $0xc] sm:$0xf]
        %v2198 = vld [vmem:[%s7 + $0x10] sm:$0xf]
        %v2199 = vld [vmem:[%s7 + $0x14] sm:$0xf]
        %v2200 = vld [vmem:[%s7 + $0x18] sm:$0xf]
        %v2201 = vld [vmem:[%s7 + $0x1c] sm:$0xf]
        %v2202 = vld [vmem:[%s7 + $0x20] sm:$0xf]
        %v2203 = vld [vmem:[%s7 + $0x24] sm:$0xf]
        %v2204 = vld [vmem:[%s7 + $0x28] sm:$0xf]
        %v2205 = vld [vmem:[%s7 + $0x2c] sm:$0xf]
        %v2206 = vld [vmem:[%s7 + $0x30] sm:$0xf]
        %v2207 = vld [vmem:[%s7 + $0x34] sm:$0xf]
        %v2208 = vld [vmem:[%s7 + $0x38] sm:$0xf]
        %v2209 = vld [vmem:[%s7 + $0x3c] sm:$0xf]
        %v2210 = vld [vmem:[%s7 + $0x40] sm:$0xf]
        %v2211 = vld [vmem:[%s7 + $0x44] sm:$0xf]
        %s2212 = scalar_lea.vmem %s7, 72
        %v2213 = vld [vmem:[%s2212] sm:$0xf]
        %v2214 = vld [vmem:[%s2212 + $0x4] sm:$0xf]
        %v2215 = vld [vmem:[%s2212 + $0x8] sm:$0xf]
        %v2216 = vld [vmem:[%s2212 + $0xc] sm:$0xf]
        %v2217 = vld [vmem:[%s2212 + $0x10] sm:$0xf]
        %v2218 = vld [vmem:[%s2212 + $0x14] sm:$0xf]
        %v2219 = vld [vmem:[%s2212 + $0x18] sm:$0xf]
        %v2220 = vld [vmem:[%s2212 + $0x1c] sm:$0xf]
        %v2221 = vld [vmem:[%s2212 + $0x20] sm:$0xf]
        %v2222 = vld [vmem:[%s2212 + $0x24] sm:$0xf]
        %v2223 = vld [vmem:[%s2212 + $0x28] sm:$0xf]
        %v2224 = vld [vmem:[%s2212 + $0x2c] sm:$0xf]
        %v2225 = vld [vmem:[%s2212 + $0x30] sm:$0xf]
        %v2226 = vld [vmem:[%s2212 + $0x34] sm:$0xf]
        %v2227 = vld [vmem:[%s2212 + $0x38] sm:$0xf]
        %v2228 = vld [vmem:[%s2212 + $0x3c] sm:$0xf]
        %v2229 = vld [vmem:[%s2212 + $0x40] sm:$0xf]
        %v2230 = vld [vmem:[%s2212 + $0x44] sm:$0xf]
        %v2232 = vshrl.u32 %v2192, 16
        %v2235 = vshrl.u32 %v2193, 16
        %v2256 = vunpack.c.l.b16 %v2213
        %v2257 = vunpack.c.l.b16 %v2214
        %v2258 = vunpack.c.l.b16 %v2215
        %v2259 = vunpack.c.l.b16 %v2216
        %v2260 = vunpack.c.l.b16 %v2217
        %v2261 = vunpack.c.l.b16 %v2218
        %v2262 = vunpack.c.l.b16 %v2219
        %v2263 = vunpack.c.l.b16 %v2220
        %v2264 = vunpack.c.l.b16 %v2221
        %v2265 = vunpack.c.l.b16 %v2222
        %v2266 = vunpack.c.l.b16 %v2223
        %v2267 = vunpack.c.l.b16 %v2224
        %v2268 = vunpack.c.l.b16 %v2225
        %v2269 = vunpack.c.l.b16 %v2226
        %v2270 = vunpack.c.l.b16 %v2227
        %v2271 = vunpack.c.l.b16 %v2228
        %v2272 = vunpack.c.l.b16 %v2229
        %v2273 = vunpack.c.l.b16 %v2230
        %v2274 = vpack.c.b16 %v2257, %v2256
        %v2275 = vpack.c.b16 %v2259, %v2258
        %v2276 = vpack.c.b16 %v2261, %v2260
        %v2277 = vpack.c.b16 %v2263, %v2262
        %v2278 = vpack.c.b16 %v2265, %v2264
        %v2279 = vpack.c.b16 %v2267, %v2266
        %v2280 = vpack.c.b16 %v2269, %v2268
        %v2281 = vpack.c.b16 %v2271, %v2270
        %v2282 = vpack.c.b16 %v2273, %v2272
        %vm2292 = vcmask 130048
        %v2294 = vsel %vm2292, %v2235, 0
        %2296 = vmatprep.subr.bf16.mxu0 0
        %2297 = vmatpush1.bf16.msra.mxu0 %v2281
        %2298 = vmatprep.subr.bf16.mxu0 0
        %2299 = vmatpush1.bf16.msra.mxu0 %v2280
        %2300 = vmatprep.subr.bf16.mxu0 0
        %2301 = vmatpush1.bf16.msra.mxu0 %v2279
        %2302 = vmatprep.subr.bf16.mxu0 0
        %2303 = vmatpush1.bf16.msra.mxu0 %v2278
        %2304 = vmatprep.subr.bf16.mxu0 0
        %2305 = vmatpush1.bf16.msra.mxu0 %v2277
        %2306 = vmatprep.subr.bf16.mxu0 0
        %2307 = vmatpush1.bf16.msra.mxu0 %v2276
        %2308 = vmatprep.subr.bf16.mxu0 0
        %2309 = vmatpush1.bf16.msra.mxu0 %v2275
        %2310 = vmatprep.subr.bf16.mxu0 0
        %2311 = vmatpush1.bf16.msra.mxu0 %v2274
        %2312 = vmatprep.subr.bf16.mxu0 0
        %2313 = vmatpush2.bf16.msra.mxu0 0
        %2314 = vmatprep.subr.bf16.mxu0 0
        %2315 = vmatpush2.bf16.msra.mxu0 0
        %2316 = vmatprep.subr.bf16.mxu0 0
        %2317 = vmatpush2.bf16.msra.mxu0 0
        %2318 = vmatprep.subr.bf16.mxu0 0
        %2319 = vmatpush2.bf16.msra.mxu0 0
        %2320 = vmatprep.subr.bf16.mxu0 0
        %2321 = vmatpush2.bf16.msra.mxu0 0
        %2322 = vmatprep.subr.bf16.mxu0 0
        %2323 = vmatpush2.bf16.msra.mxu0 0
        %2324 = vmatprep.subr.bf16.mxu0 0
        %2325 = vmatpush2.bf16.msra.mxu0 0
        %2326 = vmatprep.subr.bf16.mxu0 0
        %2327 = vmatpush2.bf16.msra.mxu0 %v2282
        %2328 = vmatprep.mubr.bf16.mxu0 %v2294
        %2329 = vmatmul.mubr.bf16.gmra.mxu0 %v2232
        %v2330 = vpop.f32.mrf.mxu0
        %v2331 = vadd.f32 0.0, %v2330
        %v2332 = vpop.f32.mrf.mxu0
        %v2333 = vpop.f32.mrf.mxu0
        %v2334 = vpop.f32.mrf.mxu0
        %2335 = vdwg.mxu0
        %v2354 = vunpack.c.l.b16 %v2194
        %v2355 = vunpack.c.l.b16 %v2195
        %v2356 = vunpack.c.l.b16 %v2196
        %v2357 = vunpack.c.l.b16 %v2197
        %v2358 = vunpack.c.l.b16 %v2198
        %v2359 = vunpack.c.l.b16 %v2199
        %v2360 = vunpack.c.l.b16 %v2200
        %v2361 = vunpack.c.l.b16 %v2201
        %v2362 = vunpack.c.l.b16 %v2202
        %v2363 = vunpack.c.l.b16 %v2203
        %v2364 = vunpack.c.l.b16 %v2204
        %v2365 = vunpack.c.l.b16 %v2205
        %v2366 = vunpack.c.l.b16 %v2206
        %v2367 = vunpack.c.l.b16 %v2207
        %v2368 = vunpack.c.l.b16 %v2208
        %v2369 = vunpack.c.l.b16 %v2209
        %v2370 = vunpack.c.l.b16 %v2210
        %v2371 = vunpack.c.l.b16 %v2211
        %v2372 = vpack.c.b16 %v2355, %v2354
        %v2373 = vpack.c.b16 %v2357, %v2356
        %v2374 = vpack.c.b16 %v2359, %v2358
        %v2375 = vpack.c.b16 %v2361, %v2360
        %v2376 = vpack.c.b16 %v2363, %v2362
        %v2377 = vpack.c.b16 %v2365, %v2364
        %v2378 = vpack.c.b16 %v2367, %v2366
        %v2379 = vpack.c.b16 %v2369, %v2368
        %v2380 = vpack.c.b16 %v2371, %v2370
        %v2390 = vsel %vm2292, %v2193, 0
        %2392 = vmatprep.subr.bf16.mxu0 0
        %2393 = vmatpush1.bf16.msra.mxu0 %v2379
        %2394 = vmatprep.subr.bf16.mxu0 0
        %2395 = vmatpush1.bf16.msra.mxu0 %v2378
        %2396 = vmatprep.subr.bf16.mxu0 0
        %2397 = vmatpush1.bf16.msra.mxu0 %v2377
        %2398 = vmatprep.subr.bf16.mxu0 0
        %2399 = vmatpush1.bf16.msra.mxu0 %v2376
        %2400 = vmatprep.subr.bf16.mxu0 0
        %2401 = vmatpush1.bf16.msra.mxu0 %v2375
        %2402 = vmatprep.subr.bf16.mxu0 0
        %2403 = vmatpush1.bf16.msra.mxu0 %v2374
        %2404 = vmatprep.subr.bf16.mxu0 0
        %2405 = vmatpush1.bf16.msra.mxu0 %v2373
        %2406 = vmatprep.subr.bf16.mxu0 0
        %2407 = vmatpush1.bf16.msra.mxu0 %v2372
        %2408 = vmatprep.subr.bf16.mxu0 0
        %2409 = vmatpush2.bf16.msra.mxu0 0
        %2410 = vmatprep.subr.bf16.mxu0 0
        %2411 = vmatpush2.bf16.msra.mxu0 0
        %2412 = vmatprep.subr.bf16.mxu0 0
        %2413 = vmatpush2.bf16.msra.mxu0 0
        %2414 = vmatprep.subr.bf16.mxu0 0
        %2415 = vmatpush2.bf16.msra.mxu0 0
        %2416 = vmatprep.subr.bf16.mxu0 0
        %2417 = vmatpush2.bf16.msra.mxu0 0
        %2418 = vmatprep.subr.bf16.mxu0 0
        %2419 = vmatpush2.bf16.msra.mxu0 0
        %2420 = vmatprep.subr.bf16.mxu0 0
        %2421 = vmatpush2.bf16.msra.mxu0 0
        %2422 = vmatprep.subr.bf16.mxu0 0
        %2423 = vmatpush2.bf16.msra.mxu0 %v2380
        %2424 = vmatprep.mubr.bf16.mxu0 %v2390
        %2425 = vmatmul.mubr.bf16.gmra.mxu0 %v2192
        %v2426 = vpop.f32.mrf.mxu0
        %v2427 = vadd.f32 %v2331, %v2426
        %v2428 = vpop.f32.mrf.mxu0
        %v2429 = vpop.f32.mrf.mxu0
        %v2430 = vpop.f32.mrf.mxu0
        %2431 = vdwg.mxu0
        %s2432 = scalar_lea.vmem %s7, 144
        %v2433 = vld [vmem:[%s2432] sm:$0xf]
        %v2434 = vld [vmem:[%s2432 + $0x4] sm:$0xf]
        %v2435 = vld [vmem:[%s2432 + $0x8] sm:$0xf]
        %v2436 = vld [vmem:[%s2432 + $0xc] sm:$0xf]
        %v2437 = vld [vmem:[%s2432 + $0x10] sm:$0xf]
        %v2438 = vld [vmem:[%s2432 + $0x14] sm:$0xf]
        %v2439 = vld [vmem:[%s2432 + $0x18] sm:$0xf]
        %v2440 = vld [vmem:[%s2432 + $0x1c] sm:$0xf]
        %v2441 = vld [vmem:[%s2432 + $0x20] sm:$0xf]
        %v2442 = vld [vmem:[%s2432 + $0x24] sm:$0xf]
        %v2443 = vld [vmem:[%s2432 + $0x28] sm:$0xf]
        %v2444 = vld [vmem:[%s2432 + $0x2c] sm:$0xf]
        %v2445 = vld [vmem:[%s2432 + $0x30] sm:$0xf]
        %v2446 = vld [vmem:[%s2432 + $0x34] sm:$0xf]
        %v2447 = vld [vmem:[%s2432 + $0x38] sm:$0xf]
        %v2448 = vld [vmem:[%s2432 + $0x3c] sm:$0xf]
        %v2449 = vld [vmem:[%s2432 + $0x40] sm:$0xf]
        %v2450 = vld [vmem:[%s2432 + $0x44] sm:$0xf]
        %v2453 = vrot.slane %v2192, 1
        %v2454 = vrot.slane %v2193, 1
        %v2474 = vunpack.c.l.b16 %v2433
        %v2475 = vunpack.c.l.b16 %v2434
        %v2476 = vunpack.c.l.b16 %v2435
        %v2477 = vunpack.c.l.b16 %v2436
        %v2478 = vunpack.c.l.b16 %v2437
        %v2479 = vunpack.c.l.b16 %v2438
        %v2480 = vunpack.c.l.b16 %v2439
        %v2481 = vunpack.c.l.b16 %v2440
        %v2482 = vunpack.c.l.b16 %v2441
        %v2483 = vunpack.c.l.b16 %v2442
        %v2484 = vunpack.c.l.b16 %v2443
        %v2485 = vunpack.c.l.b16 %v2444
        %v2486 = vunpack.c.l.b16 %v2445
        %v2487 = vunpack.c.l.b16 %v2446
        %v2488 = vunpack.c.l.b16 %v2447
        %v2489 = vunpack.c.l.b16 %v2448
        %v2490 = vunpack.c.l.b16 %v2449
        %v2491 = vunpack.c.l.b16 %v2450
        %v2492 = vpack.c.b16 %v2475, %v2474
        %v2493 = vpack.c.b16 %v2477, %v2476
        %v2494 = vpack.c.b16 %v2479, %v2478
        %v2495 = vpack.c.b16 %v2481, %v2480
        %v2496 = vpack.c.b16 %v2483, %v2482
        %v2497 = vpack.c.b16 %v2485, %v2484
        %v2498 = vpack.c.b16 %v2487, %v2486
        %v2499 = vpack.c.b16 %v2489, %v2488
        %v2500 = vpack.c.b16 %v2491, %v2490
        %v2511 = vsel %vm2292, %v2454, 0
        %2513 = vmatprep.subr.bf16.mxu0 0
        %2514 = vmatpush1.bf16.msra.mxu0 %v2499
        %2515 = vmatprep.subr.bf16.mxu0 0
        %2516 = vmatpush1.bf16.msra.mxu0 %v2498
        %2517 = vmatprep.subr.bf16.mxu0 0
        %2518 = vmatpush1.bf16.msra.mxu0 %v2497
        %2519 = vmatprep.subr.bf16.mxu0 0
        %2520 = vmatpush1.bf16.msra.mxu0 %v2496
        %2521 = vmatprep.subr.bf16.mxu0 0
        %2522 = vmatpush1.bf16.msra.mxu0 %v2495
        %2523 = vmatprep.subr.bf16.mxu0 0
        %2524 = vmatpush1.bf16.msra.mxu0 %v2494
        %2525 = vmatprep.subr.bf16.mxu0 0
        %2526 = vmatpush1.bf16.msra.mxu0 %v2493
        %2527 = vmatprep.subr.bf16.mxu0 0
        %2528 = vmatpush1.bf16.msra.mxu0 %v2492
        %2529 = vmatprep.subr.bf16.mxu0 0
        %2530 = vmatpush2.bf16.msra.mxu0 0
        %2531 = vmatprep.subr.bf16.mxu0 0
        %2532 = vmatpush2.bf16.msra.mxu0 0
        %2533 = vmatprep.subr.bf16.mxu0 0
        %2534 = vmatpush2.bf16.msra.mxu0 0
        %2535 = vmatprep.subr.bf16.mxu0 0
        %2536 = vmatpush2.bf16.msra.mxu0 0
        %2537 = vmatprep.subr.bf16.mxu0 0
        %2538 = vmatpush2.bf16.msra.mxu0 0
        %2539 = vmatprep.subr.bf16.mxu0 0
        %2540 = vmatpush2.bf16.msra.mxu0 0
        %2541 = vmatprep.subr.bf16.mxu0 0
        %2542 = vmatpush2.bf16.msra.mxu0 0
        %2543 = vmatprep.subr.bf16.mxu0 0
        %2544 = vmatpush2.bf16.msra.mxu0 %v2500
        %2545 = vmatprep.mubr.bf16.mxu0 %v2511
        %2546 = vmatmul.mubr.bf16.gmra.mxu0 %v2453
        %v2547 = vpop.f32.mrf.mxu0
        %v2548 = vadd.f32 0.0, %v2547
        %v2549 = vpop.f32.mrf.mxu0
        %v2550 = vpop.f32.mrf.mxu0
        %v2551 = vpop.f32.mrf.mxu0
        %2552 = vdwg.mxu0
        %v2553 = vadd.f32 %v2427, %v2548
        %s2554 = scalar_lea.vmem %s7, 216
        %v2555 = vld [vmem:[%s2554] sm:$0xf]
        %v2556 = vld [vmem:[%s2554 + $0x4] sm:$0xf]
        %v2557 = vld [vmem:[%s2554 + $0x8] sm:$0xf]
        %v2558 = vld [vmem:[%s2554 + $0xc] sm:$0xf]
        %v2559 = vld [vmem:[%s2554 + $0x10] sm:$0xf]
        %v2560 = vld [vmem:[%s2554 + $0x14] sm:$0xf]
        %v2561 = vld [vmem:[%s2554 + $0x18] sm:$0xf]
        %v2562 = vld [vmem:[%s2554 + $0x1c] sm:$0xf]
        %v2563 = vld [vmem:[%s2554 + $0x20] sm:$0xf]
        %v2564 = vld [vmem:[%s2554 + $0x24] sm:$0xf]
        %v2565 = vld [vmem:[%s2554 + $0x28] sm:$0xf]
        %v2566 = vld [vmem:[%s2554 + $0x2c] sm:$0xf]
        %v2567 = vld [vmem:[%s2554 + $0x30] sm:$0xf]
        %v2568 = vld [vmem:[%s2554 + $0x34] sm:$0xf]
        %v2569 = vld [vmem:[%s2554 + $0x38] sm:$0xf]
        %v2570 = vld [vmem:[%s2554 + $0x3c] sm:$0xf]
        %v2571 = vld [vmem:[%s2554 + $0x40] sm:$0xf]
        %v2572 = vld [vmem:[%s2554 + $0x44] sm:$0xf]
        %v2573 = vrot.slane %v2232, 1
        %v2574 = vrot.slane %v2235, 1
        %v2594 = vunpack.c.l.b16 %v2555
        %v2595 = vunpack.c.l.b16 %v2556
        %v2596 = vunpack.c.l.b16 %v2557
        %v2597 = vunpack.c.l.b16 %v2558
        %v2598 = vunpack.c.l.b16 %v2559
        %v2599 = vunpack.c.l.b16 %v2560
        %v2600 = vunpack.c.l.b16 %v2561
        %v2601 = vunpack.c.l.b16 %v2562
        %v2602 = vunpack.c.l.b16 %v2563
        %v2603 = vunpack.c.l.b16 %v2564
        %v2604 = vunpack.c.l.b16 %v2565
        %v2605 = vunpack.c.l.b16 %v2566
        %v2606 = vunpack.c.l.b16 %v2567
        %v2607 = vunpack.c.l.b16 %v2568
        %v2608 = vunpack.c.l.b16 %v2569
        %v2609 = vunpack.c.l.b16 %v2570
        %v2610 = vunpack.c.l.b16 %v2571
        %v2611 = vunpack.c.l.b16 %v2572
        %v2612 = vpack.c.b16 %v2595, %v2594
        %v2613 = vpack.c.b16 %v2597, %v2596
        %v2614 = vpack.c.b16 %v2599, %v2598
        %v2615 = vpack.c.b16 %v2601, %v2600
        %v2616 = vpack.c.b16 %v2603, %v2602
        %v2617 = vpack.c.b16 %v2605, %v2604
        %v2618 = vpack.c.b16 %v2607, %v2606
        %v2619 = vpack.c.b16 %v2609, %v2608
        %v2620 = vpack.c.b16 %v2611, %v2610
        %v2631 = vsel %vm2292, %v2574, 0
        %2633 = vmatprep.subr.bf16.mxu0 0
        %2634 = vmatpush1.bf16.msra.mxu0 %v2619
        %2635 = vmatprep.subr.bf16.mxu0 0
        %2636 = vmatpush1.bf16.msra.mxu0 %v2618
        %2637 = vmatprep.subr.bf16.mxu0 0
        %2638 = vmatpush1.bf16.msra.mxu0 %v2617
        %2639 = vmatprep.subr.bf16.mxu0 0
        %2640 = vmatpush1.bf16.msra.mxu0 %v2616
        %2641 = vmatprep.subr.bf16.mxu0 0
        %2642 = vmatpush1.bf16.msra.mxu0 %v2615
        %2643 = vmatprep.subr.bf16.mxu0 0
        %2644 = vmatpush1.bf16.msra.mxu0 %v2614
        %2645 = vmatprep.subr.bf16.mxu0 0
        %2646 = vmatpush1.bf16.msra.mxu0 %v2613
        %2647 = vmatprep.subr.bf16.mxu0 0
        %2648 = vmatpush1.bf16.msra.mxu0 %v2612
        %2649 = vmatprep.subr.bf16.mxu0 0
        %2650 = vmatpush2.bf16.msra.mxu0 0
        %2651 = vmatprep.subr.bf16.mxu0 0
        %2652 = vmatpush2.bf16.msra.mxu0 0
        %2653 = vmatprep.subr.bf16.mxu0 0
        %2654 = vmatpush2.bf16.msra.mxu0 0
        %2655 = vmatprep.subr.bf16.mxu0 0
        %2656 = vmatpush2.bf16.msra.mxu0 0
        %2657 = vmatprep.subr.bf16.mxu0 0
        %2658 = vmatpush2.bf16.msra.mxu0 0
        %2659 = vmatprep.subr.bf16.mxu0 0
        %2660 = vmatpush2.bf16.msra.mxu0 0
        %2661 = vmatprep.subr.bf16.mxu0 0
        %2662 = vmatpush2.bf16.msra.mxu0 0
        %2663 = vmatprep.subr.bf16.mxu0 0
        %2664 = vmatpush2.bf16.msra.mxu0 %v2620
        %2665 = vmatprep.mubr.bf16.mxu0 %v2631
        %2666 = vmatmul.mubr.bf16.gmra.mxu0 %v2573
        %v2667 = vpop.f32.mrf.mxu0
        %v2668 = vadd.f32 0.0, %v2667
        %v2669 = vpop.f32.mrf.mxu0
        %v2670 = vpop.f32.mrf.mxu0
        %v2671 = vpop.f32.mrf.mxu0
        %2672 = vdwg.mxu0
        %v2673 = vadd.f32 %v2553, %v2668
        %s2674 = scalar_lea.vmem %s7, 288
        %v2675 = vld [vmem:[%s2674] sm:$0xf]
        %v2676 = vld [vmem:[%s2674 + $0x4] sm:$0xf]
        %v2677 = vld [vmem:[%s2674 + $0x8] sm:$0xf]
        %v2678 = vld [vmem:[%s2674 + $0xc] sm:$0xf]
        %v2679 = vld [vmem:[%s2674 + $0x10] sm:$0xf]
        %v2680 = vld [vmem:[%s2674 + $0x14] sm:$0xf]
        %v2681 = vld [vmem:[%s2674 + $0x18] sm:$0xf]
        %v2682 = vld [vmem:[%s2674 + $0x1c] sm:$0xf]
        %v2683 = vld [vmem:[%s2674 + $0x20] sm:$0xf]
        %v2684 = vld [vmem:[%s2674 + $0x24] sm:$0xf]
        %v2685 = vld [vmem:[%s2674 + $0x28] sm:$0xf]
        %v2686 = vld [vmem:[%s2674 + $0x2c] sm:$0xf]
        %v2687 = vld [vmem:[%s2674 + $0x30] sm:$0xf]
        %v2688 = vld [vmem:[%s2674 + $0x34] sm:$0xf]
        %v2689 = vld [vmem:[%s2674 + $0x38] sm:$0xf]
        %v2690 = vld [vmem:[%s2674 + $0x3c] sm:$0xf]
        %v2691 = vld [vmem:[%s2674 + $0x40] sm:$0xf]
        %v2692 = vld [vmem:[%s2674 + $0x44] sm:$0xf]
        %v2693 = vrot.slane %v2192, 2
        %v2694 = vrot.slane %v2193, 2
        %v2714 = vunpack.c.l.b16 %v2675
        %v2715 = vunpack.c.l.b16 %v2676
        %v2716 = vunpack.c.l.b16 %v2677
        %v2717 = vunpack.c.l.b16 %v2678
        %v2718 = vunpack.c.l.b16 %v2679
        %v2719 = vunpack.c.l.b16 %v2680
        %v2720 = vunpack.c.l.b16 %v2681
        %v2721 = vunpack.c.l.b16 %v2682
        %v2722 = vunpack.c.l.b16 %v2683
        %v2723 = vunpack.c.l.b16 %v2684
        %v2724 = vunpack.c.l.b16 %v2685
        %v2725 = vunpack.c.l.b16 %v2686
        %v2726 = vunpack.c.l.b16 %v2687
        %v2727 = vunpack.c.l.b16 %v2688
        %v2728 = vunpack.c.l.b16 %v2689
        %v2729 = vunpack.c.l.b16 %v2690
        %v2730 = vunpack.c.l.b16 %v2691
        %v2731 = vunpack.c.l.b16 %v2692
        %v2732 = vpack.c.b16 %v2715, %v2714
        %v2733 = vpack.c.b16 %v2717, %v2716
        %v2734 = vpack.c.b16 %v2719, %v2718
        %v2735 = vpack.c.b16 %v2721, %v2720
        %v2736 = vpack.c.b16 %v2723, %v2722
        %v2737 = vpack.c.b16 %v2725, %v2724
        %v2738 = vpack.c.b16 %v2727, %v2726
        %v2739 = vpack.c.b16 %v2729, %v2728
        %v2740 = vpack.c.b16 %v2731, %v2730
        %v2751 = vsel %vm2292, %v2694, 0
        %2753 = vmatprep.subr.bf16.mxu0 0
        %2754 = vmatpush1.bf16.msra.mxu0 %v2739
        %2755 = vmatprep.subr.bf16.mxu0 0
        %2756 = vmatpush1.bf16.msra.mxu0 %v2738
        %2757 = vmatprep.subr.bf16.mxu0 0
        %2758 = vmatpush1.bf16.msra.mxu0 %v2737
        %2759 = vmatprep.subr.bf16.mxu0 0
        %2760 = vmatpush1.bf16.msra.mxu0 %v2736
        %2761 = vmatprep.subr.bf16.mxu0 0
        %2762 = vmatpush1.bf16.msra.mxu0 %v2735
        %2763 = vmatprep.subr.bf16.mxu0 0
        %2764 = vmatpush1.bf16.msra.mxu0 %v2734
        %2765 = vmatprep.subr.bf16.mxu0 0
        %2766 = vmatpush1.bf16.msra.mxu0 %v2733
        %2767 = vmatprep.subr.bf16.mxu0 0
        %2768 = vmatpush1.bf16.msra.mxu0 %v2732
        %2769 = vmatprep.subr.bf16.mxu0 0
        %2770 = vmatpush2.bf16.msra.mxu0 0
        %2771 = vmatprep.subr.bf16.mxu0 0
        %2772 = vmatpush2.bf16.msra.mxu0 0
        %2773 = vmatprep.subr.bf16.mxu0 0
        %2774 = vmatpush2.bf16.msra.mxu0 0
        %2775 = vmatprep.subr.bf16.mxu0 0
        %2776 = vmatpush2.bf16.msra.mxu0 0
        %2777 = vmatprep.subr.bf16.mxu0 0
        %2778 = vmatpush2.bf16.msra.mxu0 0
        %2779 = vmatprep.subr.bf16.mxu0 0
        %2780 = vmatpush2.bf16.msra.mxu0 0
        %2781 = vmatprep.subr.bf16.mxu0 0
        %2782 = vmatpush2.bf16.msra.mxu0 0
        %2783 = vmatprep.subr.bf16.mxu0 0
        %2784 = vmatpush2.bf16.msra.mxu0 %v2740
        %2785 = vmatprep.mubr.bf16.mxu0 %v2751
        %2786 = vmatmul.mubr.bf16.gmra.mxu0 %v2693
        %v2787 = vpop.f32.mrf.mxu0
        %v2788 = vadd.f32 0.0, %v2787
        %v2789 = vpop.f32.mrf.mxu0
        %v2790 = vpop.f32.mrf.mxu0
        %v2791 = vpop.f32.mrf.mxu0
        %2792 = vdwg.mxu0
        %v2793 = vadd.f32 %v2673, %v2788
        %v2794 = vld [vmem:[%s8] sm:$0x1]
        %v2795 = vadd.f32 %v2793, %v2794
        %v2796 = vmax.f32 %v2795, 0.0
        %v2797 = vpack.c.bf16 %v2796, %v2796
        %v2798 = vld [vmem:[%s9] sm:$0xf]
        %v2799 = vld [vmem:[%s9 + $0x4] sm:$0xf]
        %v2800 = vld [vmem:[%s9 + $0x8] sm:$0xf]
        %v2801 = vld [vmem:[%s9 + $0xc] sm:$0xf]
        %v2802 = vld [vmem:[%s9 + $0x10] sm:$0xf]
        %v2803 = vld [vmem:[%s9 + $0x14] sm:$0xf]
        %v2804 = vld [vmem:[%s9 + $0x18] sm:$0xf]
        %v2805 = vld [vmem:[%s9 + $0x1c] sm:$0xf]
        %v2806 = vld [vmem:[%s9 + $0x20] sm:$0xf]
        %v2807 = vld [vmem:[%s9 + $0x24] sm:$0xf]
        %v2808 = vld [vmem:[%s9 + $0x28] sm:$0xf]
        %v2809 = vld [vmem:[%s9 + $0x2c] sm:$0xf]
        %v2810 = vld [vmem:[%s9 + $0x30] sm:$0xf]
        %v2811 = vld [vmem:[%s9 + $0x34] sm:$0xf]
        %v2812 = vld [vmem:[%s9 + $0x38] sm:$0xf]
        %v2813 = vld [vmem:[%s9 + $0x3c] sm:$0xf]
        %v2814 = vld [vmem:[%s10] sm:$0x1]
        %v2831 = vunpack.c.l.b16 %v2798
        %v2832 = vunpack.c.l.b16 %v2799
        %v2833 = vunpack.c.l.b16 %v2800
        %v2834 = vunpack.c.l.b16 %v2801
        %v2835 = vunpack.c.l.b16 %v2802
        %v2836 = vunpack.c.l.b16 %v2803
        %v2837 = vunpack.c.l.b16 %v2804
        %v2838 = vunpack.c.l.b16 %v2805
        %v2839 = vunpack.c.l.b16 %v2806
        %v2840 = vunpack.c.l.b16 %v2807
        %v2841 = vunpack.c.l.b16 %v2808
        %v2842 = vunpack.c.l.b16 %v2809
        %v2843 = vunpack.c.l.b16 %v2810
        %v2844 = vunpack.c.l.b16 %v2811
        %v2845 = vunpack.c.l.b16 %v2812
        %v2846 = vunpack.c.l.b16 %v2813
        %v2847 = vpack.c.b16 %v2832, %v2831
        %v2848 = vpack.c.b16 %v2834, %v2833
        %v2849 = vpack.c.b16 %v2836, %v2835
        %v2850 = vpack.c.b16 %v2838, %v2837
        %v2851 = vpack.c.b16 %v2840, %v2839
        %v2852 = vpack.c.b16 %v2842, %v2841
        %v2853 = vpack.c.b16 %v2844, %v2843
        %v2854 = vpack.c.b16 %v2846, %v2845
        %2863 = vmatprep.subr.bf16.mxu0 0
        %2864 = vmatpush1.bf16.msra.mxu0 %v2854
        %2865 = vmatprep.subr.bf16.mxu0 0
        %2866 = vmatpush1.bf16.msra.mxu0 %v2853
        %2867 = vmatprep.subr.bf16.mxu0 0
        %2868 = vmatpush1.bf16.msra.mxu0 %v2852
        %2869 = vmatprep.subr.bf16.mxu0 0
        %2870 = vmatpush1.bf16.msra.mxu0 %v2851
        %2871 = vmatprep.subr.bf16.mxu0 0
        %2872 = vmatpush1.bf16.msra.mxu0 %v2850
        %2873 = vmatprep.subr.bf16.mxu0 0
        %2874 = vmatpush1.bf16.msra.mxu0 %v2849
        %2875 = vmatprep.subr.bf16.mxu0 0
        %2876 = vmatpush1.bf16.msra.mxu0 %v2848
        %2877 = vmatprep.subr.bf16.mxu0 0
        %2878 = vmatpush1.bf16.msra.mxu0 %v2847
        %2879 = vmatprep.subr.bf16.mxu0 0
        %2880 = vmatpush2.bf16.msra.mxu0 0
        %2881 = vmatprep.subr.bf16.mxu0 0
        %2882 = vmatpush2.bf16.msra.mxu0 0
        %2883 = vmatprep.subr.bf16.mxu0 0
        %2884 = vmatpush2.bf16.msra.mxu0 0
        %2885 = vmatprep.subr.bf16.mxu0 0
        %2886 = vmatpush2.bf16.msra.mxu0 0
        %2887 = vmatprep.subr.bf16.mxu0 0
        %2888 = vmatpush2.bf16.msra.mxu0 0
        %2889 = vmatprep.subr.bf16.mxu0 0
        %2890 = vmatpush2.bf16.msra.mxu0 0
        %2891 = vmatprep.subr.bf16.mxu0 0
        %2892 = vmatpush2.bf16.msra.mxu0 0
        %2893 = vmatprep.subr.bf16.mxu0 0
        %2894 = vmatpush2.bf16.msra.mxu0 0
        %2895 = vmatprep.mubr.bf16.mxu0 0
        %2896 = vmatmul.mubr.bf16.gmra.mxu0 %v2797
        %v2897 = vpop.f32.mrf.mxu0
        %v2898 = vadd.f32 %v2814, %v2897
        %v2899 = vpop.f32.mrf.mxu0
        %v2900 = vpop.f32.mrf.mxu0
        %v2901 = vpop.f32.mrf.mxu0
        %2902 = vdwg.mxu0
        %v2903 = vmax.f32 %v2898, 0.0
        %v2904 = vpack.c.bf16 %v2903, %v2903
        %v2905 = vld [vmem:[%s11] sm:$0xf]
        %v2906 = vld [vmem:[%s11 + $0x4] sm:$0xf]
        %v2907 = vld [vmem:[%s11 + $0x8] sm:$0xf]
        %v2908 = vld [vmem:[%s11 + $0xc] sm:$0xf]
        %v2909 = vld [vmem:[%s11 + $0x10] sm:$0xf]
        %v2910 = vld [vmem:[%s11 + $0x14] sm:$0xf]
        %v2911 = vld [vmem:[%s11 + $0x18] sm:$0xf]
        %v2912 = vld [vmem:[%s11 + $0x1c] sm:$0xf]
        %v2913 = vld [vmem:[%s11 + $0x20] sm:$0xf]
        %v2914 = vld [vmem:[%s11 + $0x24] sm:$0xf]
        %v2915 = vld [vmem:[%s11 + $0x28] sm:$0xf]
        %v2916 = vld [vmem:[%s11 + $0x2c] sm:$0xf]
        %v2917 = vld [vmem:[%s11 + $0x30] sm:$0xf]
        %v2918 = vld [vmem:[%s11 + $0x34] sm:$0xf]
        %v2919 = vld [vmem:[%s11 + $0x38] sm:$0xf]
        %v2920 = vld [vmem:[%s11 + $0x3c] sm:$0xf]
        %v2921 = vld [vmem:[%s12] sm:$0x1]
        %v2938 = vunpack.c.l.b16 %v2905
        %v2939 = vunpack.c.l.b16 %v2906
        %v2940 = vunpack.c.l.b16 %v2907
        %v2941 = vunpack.c.l.b16 %v2908
        %v2942 = vunpack.c.l.b16 %v2909
        %v2943 = vunpack.c.l.b16 %v2910
        %v2944 = vunpack.c.l.b16 %v2911
        %v2945 = vunpack.c.l.b16 %v2912
        %v2946 = vunpack.c.l.b16 %v2913
        %v2947 = vunpack.c.l.b16 %v2914
        %v2948 = vunpack.c.l.b16 %v2915
        %v2949 = vunpack.c.l.b16 %v2916
        %v2950 = vunpack.c.l.b16 %v2917
        %v2951 = vunpack.c.l.b16 %v2918
        %v2952 = vunpack.c.l.b16 %v2919
        %v2953 = vunpack.c.l.b16 %v2920
        %v2954 = vpack.c.b16 %v2939, %v2938
        %v2955 = vpack.c.b16 %v2941, %v2940
        %v2956 = vpack.c.b16 %v2943, %v2942
        %v2957 = vpack.c.b16 %v2945, %v2944
        %v2958 = vpack.c.b16 %v2947, %v2946
        %v2959 = vpack.c.b16 %v2949, %v2948
        %v2960 = vpack.c.b16 %v2951, %v2950
        %v2961 = vpack.c.b16 %v2953, %v2952
        %2970 = vmatprep.subr.bf16.mxu0 0
        %2971 = vmatpush1.bf16.msra.mxu0 %v2961
        %2972 = vmatprep.subr.bf16.mxu0 0
        %2973 = vmatpush1.bf16.msra.mxu0 %v2960
        %2974 = vmatprep.subr.bf16.mxu0 0
        %2975 = vmatpush1.bf16.msra.mxu0 %v2959
        %2976 = vmatprep.subr.bf16.mxu0 0
        %2977 = vmatpush1.bf16.msra.mxu0 %v2958
        %2978 = vmatprep.subr.bf16.mxu0 0
        %2979 = vmatpush1.bf16.msra.mxu0 %v2957
        %2980 = vmatprep.subr.bf16.mxu0 0
        %2981 = vmatpush1.bf16.msra.mxu0 %v2956
        %2982 = vmatprep.subr.bf16.mxu0 0
        %2983 = vmatpush1.bf16.msra.mxu0 %v2955
        %2984 = vmatprep.subr.bf16.mxu0 0
        %2985 = vmatpush1.bf16.msra.mxu0 %v2954
        %2986 = vmatprep.subr.bf16.mxu0 0
        %2987 = vmatpush2.bf16.msra.mxu0 0
        %2988 = vmatprep.subr.bf16.mxu0 0
        %2989 = vmatpush2.bf16.msra.mxu0 0
        %2990 = vmatprep.subr.bf16.mxu0 0
        %2991 = vmatpush2.bf16.msra.mxu0 0
        %2992 = vmatprep.subr.bf16.mxu0 0
        %2993 = vmatpush2.bf16.msra.mxu0 0
        %2994 = vmatprep.subr.bf16.mxu0 0
        %2995 = vmatpush2.bf16.msra.mxu0 0
        %2996 = vmatprep.subr.bf16.mxu0 0
        %2997 = vmatpush2.bf16.msra.mxu0 0
        %2998 = vmatprep.subr.bf16.mxu0 0
        %2999 = vmatpush2.bf16.msra.mxu0 0
        %3000 = vmatprep.subr.bf16.mxu0 0
        %3001 = vmatpush2.bf16.msra.mxu0 0
        %3002 = vmatprep.mubr.bf16.mxu0 0
        %3003 = vmatmul.mubr.bf16.gmra.mxu0 %v2904
        %v3004 = vpop.f32.mrf.mxu0
        %v3005 = vadd.f32 %v2921, %v3004
        %v3006 = vpop.f32.mrf.mxu0
        %v3007 = vpop.f32.mrf.mxu0
        %v3008 = vpop.f32.mrf.mxu0
        %3009 = vdwg.mxu0
        %3010 = vst [vmem:[%s435] sm:$0x1] %v3005
        %s3011 = sand.u32 %s313, 1
        %s3012 = scalar_lea.sflag [#allocation3], %s3011
        %s3013 = sand.u32 %s313, 1
        %s3014 = scalar_lea.vmem [#allocation2], %s3013
        // Predicated region
        $region73: #{lenet_forward.1} parent=71 // pred_check
          %p3015 = pneg %p323
        $region74: #{lenet_forward.1} parent=71 // pred_check_branch
          %3017 = sbr.rel (%p3015) target = $region76
        $region75: #{lenet_forward.1} parent=71 // pred_region
          %s3019 = ssub.s32 16, 16
          %3020 = vsyncadd %s3012, %s3019
          %s3021 = smul.addr %s27, 16
          %s3022 = scalar_lea.hbm %s13, %s3021
          %s3024 = sshll.u32 %s3014, 4
          %s3025 = int_to_ptr.vmem [resolvable:$true] %s3024
          %3027 = dma.vmem_to_hbm [thread:$0]  %s3025, 16, %s3022, %s3012
        $region76: #{lenet_forward.1} parent=71 // pred_fallthru
          _
      $region72: #{lenet_forward.1} parent=5 // pred_fallthru
        _
      %p3028 = scmp.le.s32.totalorder 2, %s22
      // Predicated region
      $region77: #{lenet_forward.1} parent=5 // pred_check
        %p3029 = pneg %p3028
      $region78: #{lenet_forward.1} parent=5 // pred_check_branch
        %3031 = sbr.rel (%p3029) target = $region80
      $region79: #{lenet_forward.1} parent=5 // pred_region
        %s3032 = ssub.s32 %s22, 2
        // Predicated region
        $region81: #{lenet_forward.1} parent=79 // pred_check
          %p3033 = pneg %p329
        $region82: #{lenet_forward.1} parent=79 // pred_check_branch
          %3035 = sbr.rel (%p3033) target = $region84
        $region83: #{lenet_forward.1} parent=79 // pred_region
          %s3036 = sand.u32 %s314, 1
          %s3037 = scalar_lea.sflag [#allocation3], %s3036
          %s3038 = sand.u32 %s314, 1
          %s3039 = scalar_lea.vmem [#allocation2], %s3038
          %3040 = dma.done %s3037, 16
        $region84: #{lenet_forward.1} parent=79 // pred_fallthru
          _
      $region80: #{lenet_forward.1} parent=5 // pred_fallthru
        _
    $region6: #{lenet_forward.1} parent=1 // loop_footer
      %s26 = sadd.s32 1, %s22
    $region7: #{lenet_forward.1} parent=1 // loop_footer_branch
      %21 = sbr.rel target = $region3
    $region8: #{lenet_forward.1} parent=1 // loop_exit
      _
    %3041 = vsyncpa [#allocation3], 1
    %s3042 = scalar_lea.sflag [#allocation3], 1
    %3043 = vsyncpa %s3042, 1

</llo_original>
